<compile_context>
chip_gen: v6e
topology: v6e:2x2x1
jax: 0.10.0
libtpu: 0.0.40
codegen_flags: <defaults>
</compile_context>

<pallas_src>
import functools

import numpy as np
import jax
import jax.numpy as jnp
from jax.experimental import pallas as pl
from jax.experimental.pallas import tpu as pltpu

LEAK = 0.1
BN_EPS = 1e-5


def _largest_divisor_le(n, cap):
    for d in range(min(n, max(cap, 1)), 0, -1):
        if n % d == 0:
            return d
    return 1


def _pick_row_tile(ho, wo, max_rows=512):
    """Largest divisor TH of `ho` with TH*wo <= max_rows, preferring TH*wo % 8 == 0."""
    cap = max(1, max_rows // max(wo, 1))
    fallback = None
    for th in range(min(ho, cap), 0, -1):
        if ho % th == 0:
            if (th * wo) % 8 == 0:
                return th
            if fallback is None:
                fallback = th
    return fallback if fallback is not None else ho


def _vmem_limit_bytes():
    """Generation-aware VMEM budget (v5e/v6e: 128 MiB physical, v7x: 64 MiB)."""
    try:
        info = pltpu.get_tpu_info()
        cap = getattr(info, "vmem_capacity_bytes", None)
        if cap:
            return int(min(cap * 3 // 4, 96 * 1024 * 1024))
    except Exception:
        pass
    return 32 * 1024 * 1024


# ----------------------------------------------------------------------------
# Pass 1: implicit-GEMM 3x3 conv + bias + LeakyReLU + per-tile BN partial stats.
# ----------------------------------------------------------------------------
def _conv_act_kernel(x_ref, w_ref, b_ref, y_ref, ssum_ref, ssq_ref, *, stride, th, wo):
    """One (image, output-row-tile) grid cell.

    x_ref   : (1, s*s*(TH+halo), Ws, Cin) bf16  halo'd, parity-split input window
                                                (rows are plane-major, plane-row-minor)
    w_ref   : (9*Cin, Cout)               bf16  tap-concatenated weights
    b_ref   : (1, Cout)                   f32   bias
    y_ref   : (1, TH*Wo, Cout)            bf16  pre-BN activation tile
    ssum_ref: (1, 1, Cout)                f32   per-tile channel sum      (from f32 acc)
    ssq_ref : (1, 1, Cout)                f32   per-tile channel sum(x^2) (from f32 acc)
    """
    s = stride
    halo = 2 // s                       # valid for stride in {1, 2}
    thi = th + halo

    # Build the packed (rows, 9*Cin) operand ONCE (no per-tap accumulator streaming),
    # then a single big-K MXU matmul.
    taps = []
    for kh in range(3):
        for kw in range(3):
            plane = (kh % s) * s + (kw % s)
            r0 = plane * thi + kh // s   # static slice start
            c0 = kw // s
            taps.append(x_ref[0, r0:r0 + th, c0:c0 + wo, :])
    patch = jnp.concatenate(taps, axis=-1).reshape(th * wo, -1)      # (rows, 9*Cin) bf16
    acc = jnp.dot(patch, w_ref[...], preferred_element_type=jnp.float32)

    y = acc + b_ref[...]
    y = jnp.where(y >= 0.0, y, LEAK * y)                             # LeakyReLU(0.1), f32
    cout = y_ref.shape[-1]
    y_ref[0] = y.astype(y_ref.dtype)                                 # bf16 store
    ssum_ref[...] = jnp.sum(y, axis=0).reshape(1, 1, cout)
    ssq_ref[...] = jnp.sum(y * y, axis=0).reshape(1, 1, cout)


# ----------------------------------------------------------------------------
# Pass 2: apply BatchNorm with the global batch statistics (in-place bf16 affine).
# ----------------------------------------------------------------------------
def _bn_apply_kernel(y_ref, sc_ref, sh_ref, o_ref):
    y = y_ref[...].astype(jnp.float32)
    o_ref[...] = (y * sc_ref[...] + sh_ref[...]).astype(o_ref.dtype)


def conv_block(x_nhwc, w_hwio, b, gamma, beta, stride, *, max_rows=512):
    """One PyTorch `conv(...)` block: Conv2d(3x3, pad=1, stride) + LeakyReLU(0.1) + BN(train)."""
    N, H, W, Cin = x_nhwc.shape
    kh_, kw_, cin_w, Cout = w_hwio.shape
    assert (kh_, kw_) == (3, 3) and cin_w == Cin
    s = int(stride)
    assert s in (1, 2), "halo geometry below is written for stride 1 or 2"

    Ho = (H + 2 - 3) // s + 1
    Wo = (W + 2 - 3) // s + 1
    halo = 2 // s                        # extra parity-plane rows/cols touched by the window
    Hs, Ws = Ho + halo, Wo + halo
    P = s * s

    # Zero-pad + parity split ("space-to-batch"): every 3x3 tap becomes a contiguous
    # window of one parity plane.  Same byte count as the input (no 9x im2col in HBM);
    # XLA fuses the pad/slice/stack into one pass.
    x_pad = jnp.pad(x_nhwc.astype(jnp.bfloat16),
                    ((0, 0), (1, s * Hs - H - 1), (1, s * Ws - W - 1), (0, 0)))
    planes = [x_pad[:, p::s, q::s, :] for p in range(s) for q in range(s)]
    x_planes = jnp.stack(planes, axis=1)                 # (N, P, Hs, Ws, Cin) bf16

    # Output-row tiling with a halo: per grid step the kernel only needs TH+halo plane rows.
    TH = _pick_row_tile(Ho, Wo, max_rows=max_rows)
    NT = Ho // TH
    THI = TH + halo
    rows = TH * Wo
    G = N * NT
    M = N * Ho * Wo

    if NT == 1:
        x_tiles = x_planes.reshape(G, P * THI, Ws, Cin)              # THI == Hs here
    else:
        ridx = (jnp.arange(NT) * TH)[:, None] + jnp.arange(THI)[None, :]   # (NT, THI)
        x_tiles = x_planes[:, :, ridx, :, :]                         # (N, P, NT, THI, Ws, Cin)
        x_tiles = jnp.moveaxis(x_tiles, 2, 1).reshape(G, P * THI, Ws, Cin)

    w2d = w_hwio.reshape(9 * Cin, Cout).astype(jnp.bfloat16)         # tap-major, Cin-minor
    b_row = b.astype(jnp.float32).reshape(1, Cout)

    vmem = _vmem_limit_bytes()
    kern = functools.partial(_conv_act_kernel, stride=s, th=TH, wo=Wo)

    y, ssum, ssq = pl.pallas_call(
        kern,
        grid=(G,),
        in_specs=[
            pl.BlockSpec((1, P * THI, Ws, Cin), lambda g: (g, 0, 0, 0)),
            pl.BlockSpec((9 * Cin, Cout), lambda g: (0, 0)),
            pl.BlockSpec((1, Cout), lambda g: (0, 0)),
        ],
        out_specs=(
            pl.BlockSpec((1, rows, Cout), lambda g: (g, 0, 0)),
            pl.BlockSpec((1, 1, Cout), lambda g: (g, 0, 0)),
            pl.BlockSpec((1, 1, Cout), lambda g: (g, 0, 0)),
        ),
        out_shape=(
            jax.ShapeDtypeStruct((G, rows, Cout), jnp.bfloat16),
            jax.ShapeDtypeStruct((G, 1, Cout), jnp.float32),
            jax.ShapeDtypeStruct((G, 1, Cout), jnp.float32),
        ),
        compiler_params=pltpu.CompilerParams(
            dimension_semantics=("parallel",), vmem_limit_bytes=vmem),
    )(x_tiles, w2d, b_row)

    # Tiny O(C) reduction -> training-mode BN statistics (biased variance) in f32.
    # NOTE: E[x^2] - E[x]^2 can cancel for very large activations; clamped at 0 (the
    # sums themselves are taken from the f32 accumulator, fine at these scales).
    cnt = float(M)
    mean = jnp.sum(ssum, axis=(0, 1)) / cnt
    ex2 = jnp.sum(ssq, axis=(0, 1)) / cnt
    var = jnp.maximum(ex2 - mean * mean, 0.0)
    scale = (gamma.astype(jnp.float32) * jax.lax.rsqrt(var + BN_EPS)).reshape(1, 1, Cout)
    shift = beta.astype(jnp.float32).reshape(1, 1, Cout) - mean.reshape(1, 1, Cout) * scale

    # Pass 2: in-place (aliased) bf16 per-channel affine with the global statistics.
    TB = _largest_divisor_le(G, max(1, 8192 // rows))
    z = pl.pallas_call(
        _bn_apply_kernel,
        grid=(G // TB,),
        in_specs=[
            pl.BlockSpec((TB, rows, Cout), lambda i: (i, 0, 0)),
            pl.BlockSpec((1, 1, Cout), lambda i: (0, 0, 0)),
            pl.BlockSpec((1, 1, Cout), lambda i: (0, 0, 0)),
        ],
        out_specs=pl.BlockSpec((TB, rows, Cout), lambda i: (i, 0, 0)),
        out_shape=jax.ShapeDtypeStruct((G, rows, Cout), jnp.bfloat16),
        input_output_aliases={0: 0},
        compiler_params=pltpu.CompilerParams(
            dimension_semantics=("parallel",), vmem_limit_bytes=vmem),
    )(y, scale, shift)

    # Rows are already in (n, ho, wo) order -> plain reshape, compact bf16 activation.
    return z.reshape(N, Ho, Wo, Cout)


def pyramid_block(x_nchw, params):
    """PyramidBlock forward: NCHW in (PyTorch convention), NCHW out."""
    x = jnp.transpose(x_nchw, (0, 2, 3, 1)).astype(jnp.bfloat16)     # NHWC, bf16 once
    for (w, b, g, bt), s in zip(params, (2, 1, 1)):
        x = conv_block(x, w, b, g, bt, s)
    return jnp.transpose(x, (0, 3, 1, 2)).astype(jnp.float32)


def init_params(key, cin, cout):
    """Deterministic synthetic init (PyTorch-like uniform(-1/sqrt(fan_in), ...))."""
    params = []
    for i, (ci, co) in enumerate([(cin, cout), (cout, cout), (cout, cout)]):
        kw_key, kb_key = jax.random.split(jax.random.fold_in(key, i))
        bound = 1.0 / np.sqrt(ci * 9)
        w = jax.random.uniform(kw_key, (3, 3, ci, co), jnp.float32, -bound, bound)
        b = jax.random.uniform(kb_key, (co,), jnp.float32, -bound, bound)
        params.append((w, b, jnp.ones((co,), jnp.float32), jnp.zeros((co,), jnp.float32)))
    return params


def reference(x_nchw, params, quantize_bf16):
    """Pure-JAX forward of the same module.

    quantize_bf16=True mimics the kernels' roundings (bf16 conv operands, bf16 pre-BN
    activation store, bf16 inter-layer activations) so the comparison is tight;
    =False is the exact f32 PyTorch-semantics forward (looser tolerance).
    """
    x = jnp.transpose(x_nchw, (0, 2, 3, 1)).astype(jnp.float32)
    for (w, b, g, bt), s in zip(params, (2, 1, 1)):
        if quantize_bf16:
            xq = x.astype(jnp.bfloat16).astype(jnp.float32)
            wq = w.astype(jnp.bfloat16).astype(jnp.float32)
        else:
            xq, wq = x, w
        y = jax.lax.conv_general_dilated(
            xq, wq, window_strides=(s, s), padding=((1, 1), (1, 1)),
            dimension_numbers=('NHWC', 'HWIO', 'NHWC'),
            precision=jax.lax.Precision.HIGHEST) + b
        y = jnp.where(y >= 0.0, y, LEAK * y)
        m = jnp.mean(y, axis=(0, 1, 2))
        v = jnp.mean((y - m) ** 2, axis=(0, 1, 2))
        if quantize_bf16:
            y = y.astype(jnp.bfloat16).astype(jnp.float32)           # bf16 pre-BN store
        scale = g * jax.lax.rsqrt(v + BN_EPS)
        shift = bt - m * scale
        x = y * scale + shift
        if quantize_bf16:
            x = x.astype(jnp.bfloat16).astype(jnp.float32)           # bf16 inter-layer act
    return jnp.transpose(x, (0, 3, 1, 2))


if __name__ == "__main__":
    key = jax.random.PRNGKey(0)
    k_x, k_p = jax.random.split(key)

    N, Cin, H, W = 2, 4, 16, 16
    Cout = 8
    x = jax.random.normal(k_x, (N, Cin, H, W), jnp.float32)
    params = init_params(k_p, Cin, Cout)

    fwd = jax.jit(pyramid_block)
    out = jax.block_until_ready(fwd(x, params))
    assert out.shape == (N, Cout, H // 2, W // 2), out.shape

    ref_q = jax.block_until_ready(reference(x, params, True))   # matches kernel roundings
    ref_f = jax.block_until_ready(reference(x, params, False))  # exact f32 reference

    out_np = np.asarray(out)
    err_q = float(np.max(np.abs(out_np - np.asarray(ref_q))))
    err_f = float(np.max(np.abs(out_np - np.asarray(ref_f))))
    assert np.allclose(out_np, np.asarray(ref_q), atol=2e-2, rtol=2e-2), err_q
    assert np.allclose(out_np, np.asarray(ref_f), atol=1.5e-1, rtol=1.5e-1), err_f

    print("KERNEL_OK")
</pallas_src>

<mosaic_0001>
module attributes {stable_mosaic.version = 11 : i64} {
  func.func @_conv_act_kernel(%arg0: i32, %arg1: memref<1x36x9x4xbf16, #tpu.memory_space<vmem>>, %arg2: memref<36x8xbf16, #tpu.memory_space<vmem>>, %arg3: memref<1x8xf32, #tpu.memory_space<vmem>>, %arg4: memref<1x64x8xbf16, #tpu.memory_space<vmem>>, %arg5: memref<1x1x8xf32, #tpu.memory_space<vmem>>, %arg6: memref<1x1x8xf32, #tpu.memory_space<vmem>>) attributes {dimension_semantics = [#tpu.dimension_semantics<parallel>], iteration_bounds = array<i64: 2>, scalar_prefetch = 0 : i64, scratch_operands = 0 : i64, tpu.core_type = #tpu.core_type<tc>, window_params = [{transform_indices = @transform_0, window_bounds = array<i64: 1, 36, 9, 4>}, {pipeline_mode = #tpu.pipeline_mode<synchronous>, transform_indices = @transform_1, window_bounds = array<i64: 36, 8>}, {pipeline_mode = #tpu.pipeline_mode<synchronous>, transform_indices = @transform_2, window_bounds = array<i64: 1, 8>}, {transform_indices = @transform_3, window_bounds = array<i64: 1, 64, 8>}, {transform_indices = @transform_4, window_bounds = array<i64: 1, 1, 8>}, {transform_indices = @transform_5, window_bounds = array<i64: 1, 1, 8>}]} {
    %c0 = arith.constant 0 : index
    %c0_0 = arith.constant 0 : index
    %c0_1 = arith.constant 0 : index
    %c0_2 = arith.constant 0 : index
    %0 = vector.load %arg1[%c0, %c0_0, %c0_1, %c0_2] : memref<1x36x9x4xbf16, #tpu.memory_space<vmem>>, vector<1x8x8x4xbf16>
    %1 = vector.shape_cast %0 : vector<1x8x8x4xbf16> to vector<8x8x4xbf16>
    %c0_3 = arith.constant 0 : index
    %c9 = arith.constant 9 : index
    %c0_4 = arith.constant 0 : index
    %c0_5 = arith.constant 0 : index
    %2 = vector.load %arg1[%c0_3, %c9, %c0_4, %c0_5] : memref<1x36x9x4xbf16, #tpu.memory_space<vmem>>, vector<1x8x8x4xbf16>
    %3 = vector.shape_cast %2 : vector<1x8x8x4xbf16> to vector<8x8x4xbf16>
    %c0_6 = arith.constant 0 : index
    %c0_7 = arith.constant 0 : index
    %c1 = arith.constant 1 : index
    %c0_8 = arith.constant 0 : index
    %4 = vector.load %arg1[%c0_6, %c0_7, %c1, %c0_8] : memref<1x36x9x4xbf16, #tpu.memory_space<vmem>>, vector<1x8x8x4xbf16>
    %5 = vector.shape_cast %4 : vector<1x8x8x4xbf16> to vector<8x8x4xbf16>
    %c0_9 = arith.constant 0 : index
    %c18 = arith.constant 18 : index
    %c0_10 = arith.constant 0 : index
    %c0_11 = arith.constant 0 : index
    %6 = vector.load %arg1[%c0_9, %c18, %c0_10, %c0_11] : memref<1x36x9x4xbf16, #tpu.memory_space<vmem>>, vector<1x8x8x4xbf16>
    %7 = vector.shape_cast %6 : vector<1x8x8x4xbf16> to vector<8x8x4xbf16>
    %c0_12 = arith.constant 0 : index
    %c27 = arith.constant 27 : index
    %c0_13 = arith.constant 0 : index
    %c0_14 = arith.constant 0 : index
    %8 = vector.load %arg1[%c0_12, %c27, %c0_13, %c0_14] : memref<1x36x9x4xbf16, #tpu.memory_space<vmem>>, vector<1x8x8x4xbf16>
    %9 = vector.shape_cast %8 : vector<1x8x8x4xbf16> to vector<8x8x4xbf16>
    %c0_15 = arith.constant 0 : index
    %c18_16 = arith.constant 18 : index
    %c1_17 = arith.constant 1 : index
    %c0_18 = arith.constant 0 : index
    %10 = vector.load %arg1[%c0_15, %c18_16, %c1_17, %c0_18] : memref<1x36x9x4xbf16, #tpu.memory_space<vmem>>, vector<1x8x8x4xbf16>
    %11 = vector.shape_cast %10 : vector<1x8x8x4xbf16> to vector<8x8x4xbf16>
    %c0_19 = arith.constant 0 : index
    %c1_20 = arith.constant 1 : index
    %c0_21 = arith.constant 0 : index
    %c0_22 = arith.constant 0 : index
    %12 = vector.load %arg1[%c0_19, %c1_20, %c0_21, %c0_22] : memref<1x36x9x4xbf16, #tpu.memory_space<vmem>>, vector<1x8x8x4xbf16>
    %13 = vector.shape_cast %12 : vector<1x8x8x4xbf16> to vector<8x8x4xbf16>
    %c0_23 = arith.constant 0 : index
    %c10 = arith.constant 10 : index
    %c0_24 = arith.constant 0 : index
    %c0_25 = arith.constant 0 : index
    %14 = vector.load %arg1[%c0_23, %c10, %c0_24, %c0_25] : memref<1x36x9x4xbf16, #tpu.memory_space<vmem>>, vector<1x8x8x4xbf16>
    %15 = vector.shape_cast %14 : vector<1x8x8x4xbf16> to vector<8x8x4xbf16>
    %c0_26 = arith.constant 0 : index
    %c1_27 = arith.constant 1 : index
    %c1_28 = arith.constant 1 : index
    %c0_29 = arith.constant 0 : index
    %16 = vector.load %arg1[%c0_26, %c1_27, %c1_28, %c0_29] : memref<1x36x9x4xbf16, #tpu.memory_space<vmem>>, vector<1x8x8x4xbf16>
    %17 = vector.shape_cast %16 : vector<1x8x8x4xbf16> to vector<8x8x4xbf16>
    %18 = tpu.concatenate %1, %3, %5, %7, %9, %11, %13, %15, %17 in 2 : vector<8x8x4xbf16>, vector<8x8x4xbf16>, vector<8x8x4xbf16>, vector<8x8x4xbf16>, vector<8x8x4xbf16>, vector<8x8x4xbf16>, vector<8x8x4xbf16>, vector<8x8x4xbf16>, vector<8x8x4xbf16> -> vector<8x8x36xbf16>
    %19 = vector.shape_cast %18 : vector<8x8x36xbf16> to vector<64x36xbf16>
    %c0_30 = arith.constant 0 : index
    %c0_31 = arith.constant 0 : index
    %20 = vector.load %arg2[%c0_30, %c0_31] : memref<36x8xbf16, #tpu.memory_space<vmem>>, vector<36x8xbf16>
    %cst = arith.constant dense<0.000000e+00> : vector<64x8xf32>
    %21 = tpu.matmul %19, %20, %cst {dimension_numbers = #tpu.dot_dimension_numbers<[1], [0], [0], [1], [0, 0, 1, 1], [], []>} : vector<64x36xbf16>, vector<36x8xbf16>, vector<64x8xf32> -> vector<64x8xf32>
    %c0_32 = arith.constant 0 : index
    %c0_33 = arith.constant 0 : index
    %22 = vector.load %arg3[%c0_32, %c0_33] : memref<1x8xf32, #tpu.memory_space<vmem>>, vector<1x8xf32>
    %23 = vector.broadcast %22 : vector<1x8xf32> to vector<64x8xf32>
    %24 = arith.addf %21, %23 : vector<64x8xf32>
    %cst_34 = arith.constant 0.000000e+00 : f32
    %25 = vector.broadcast %cst_34 : f32 to vector<64x8xf32>
    %26 = arith.cmpf oge, %24, %25 : vector<64x8xf32>
    %cst_35 = arith.constant 1.000000e-01 : f32
    %27 = vector.broadcast %cst_35 : f32 to vector<64x8xf32>
    %28 = arith.mulf %27, %24 : vector<64x8xf32>
    %29 = arith.select %26, %24, %28 : vector<64x8xi1>, vector<64x8xf32>
    %30 = arith.truncf %29 : vector<64x8xf32> to vector<64x8xbf16>
    %c0_36 = arith.constant 0 : index
    %c0_37 = arith.constant 0 : index
    %c0_38 = arith.constant 0 : index
    %31 = vector.load %arg4[%c0_36, %c0_37, %c0_38] : memref<1x64x8xbf16, #tpu.memory_space<vmem>>, vector<1x64x8xbf16>
    %32 = vector.shape_cast %31 : vector<1x64x8xbf16> to vector<64x8xbf16>
    %33 = vector.shape_cast %30 : vector<64x8xbf16> to vector<1x64x8xbf16>
    tpu.vector_store %arg4[%c0_36, %c0_37, %c0_38], %33 {strides = array<i32>} : memref<1x64x8xbf16, #tpu.memory_space<vmem>>, vector<1x64x8xbf16>,
    %cst_39 = arith.constant dense<0.000000e+00> : vector<8xf32>
    %34 = vector.multi_reduction <add>, %29, %cst_39 [0] : vector<64x8xf32> to vector<8xf32>
    %35 = vector.shape_cast %34 : vector<8xf32> to vector<1x1x8xf32>
    %c0_40 = arith.constant 0 : index
    %c0_41 = arith.constant 0 : index
    %c0_42 = arith.constant 0 : index
    %36 = vector.load %arg5[%c0_40, %c0_41, %c0_42] : memref<1x1x8xf32, #tpu.memory_space<vmem>>, vector<1x1x8xf32>
    tpu.vector_store %arg5[%c0_40, %c0_41, %c0_42], %35 {strides = array<i32>} : memref<1x1x8xf32, #tpu.memory_space<vmem>>, vector<1x1x8xf32>,
    %37 = arith.mulf %29, %29 : vector<64x8xf32>
    %cst_43 = arith.constant dense<0.000000e+00> : vector<8xf32>
    %38 = vector.multi_reduction <add>, %37, %cst_43 [0] : vector<64x8xf32> to vector<8xf32>
    %39 = vector.shape_cast %38 : vector<8xf32> to vector<1x1x8xf32>
    %c0_44 = arith.constant 0 : index
    %c0_45 = arith.constant 0 : index
    %c0_46 = arith.constant 0 : index
    %40 = vector.load %arg6[%c0_44, %c0_45, %c0_46] : memref<1x1x8xf32, #tpu.memory_space<vmem>>, vector<1x1x8xf32>
    tpu.vector_store %arg6[%c0_44, %c0_45, %c0_46], %39 {strides = array<i32>} : memref<1x1x8xf32, #tpu.memory_space<vmem>>, vector<1x1x8xf32>,
    return
  }
  func.func @transform_0(%arg0: i32) -> (i32, i32, i32, i32) {
    %c0_i32 = arith.constant 0 : i32
    %c0_i32_0 = arith.constant 0 : i32
    %c0_i32_1 = arith.constant 0 : i32
    %c0_i32_2 = arith.constant 0 : i32
    return %arg0, %c0_i32, %c0_i32_0, %c0_i32_1 : i32, i32, i32, i32
  }
  func.func @transform_1(%arg0: i32) -> (i32, i32) {
    %c0_i32 = arith.constant 0 : i32
    %c0_i32_0 = arith.constant 0 : i32
    %c0_i32_1 = arith.constant 0 : i32
    return %c0_i32, %c0_i32_0 : i32, i32
  }
  func.func @transform_2(%arg0: i32) -> (i32, i32) {
    %c0_i32 = arith.constant 0 : i32
    %c0_i32_0 = arith.constant 0 : i32
    %c0_i32_1 = arith.constant 0 : i32
    return %c0_i32, %c0_i32_0 : i32, i32
  }
  func.func @transform_3(%arg0: i32) -> (i32, i32, i32) {
    %c0_i32 = arith.constant 0 : i32
    %c0_i32_0 = arith.constant 0 : i32
    %c0_i32_1 = arith.constant 0 : i32
    return %arg0, %c0_i32, %c0_i32_0 : i32, i32, i32
  }
  func.func @transform_4(%arg0: i32) -> (i32, i32, i32) {
    %c0_i32 = arith.constant 0 : i32
    %c0_i32_0 = arith.constant 0 : i32
    %c0_i32_1 = arith.constant 0 : i32
    return %arg0, %c0_i32, %c0_i32_0 : i32, i32, i32
  }
  func.func @transform_5(%arg0: i32) -> (i32, i32, i32) {
    %c0_i32 = arith.constant 0 : i32
    %c0_i32_0 = arith.constant 0 : i32
    %c0_i32_1 = arith.constant 0 : i32
    return %arg0, %c0_i32, %c0_i32_0 : i32, i32, i32
  }
}

module attributes {stable_mosaic.version = 11 : i64} {
  func.func @_bn_apply_kernel(%arg0: i32, %arg1: memref<2x64x8xbf16, #tpu.memory_space<vmem>>, %arg2: memref<1x1x8xf32, #tpu.memory_space<vmem>>, %arg3: memref<1x1x8xf32, #tpu.memory_space<vmem>>, %arg4: memref<2x64x8xbf16, #tpu.memory_space<vmem>>) attributes {dimension_semantics = [#tpu.dimension_semantics<parallel>], iteration_bounds = array<i64: 1>, scalar_prefetch = 0 : i64, scratch_operands = 0 : i64, tpu.core_type = #tpu.core_type<tc>, window_params = [{transform_indices = @transform_0, window_bounds = array<i64: 2, 64, 8>}, {pipeline_mode = #tpu.pipeline_mode<synchronous>, transform_indices = @transform_1, window_bounds = array<i64: 1, 1, 8>}, {pipeline_mode = #tpu.pipeline_mode<synchronous>, transform_indices = @transform_2, window_bounds = array<i64: 1, 1, 8>}, {transform_indices = @transform_3, window_bounds = array<i64: 2, 64, 8>}]} {
    %c0 = arith.constant 0 : index
    %c0_0 = arith.constant 0 : index
    %c0_1 = arith.constant 0 : index
    %0 = vector.load %arg1[%c0, %c0_0, %c0_1] : memref<2x64x8xbf16, #tpu.memory_space<vmem>>, vector<2x64x8xbf16>
    %1 = arith.extf %0 : vector<2x64x8xbf16> to vector<2x64x8xf32>
    %c0_2 = arith.constant 0 : index
    %c0_3 = arith.constant 0 : index
    %c0_4 = arith.constant 0 : index
    %2 = vector.load %arg2[%c0_2, %c0_3, %c0_4] : memref<1x1x8xf32, #tpu.memory_space<vmem>>, vector<1x1x8xf32>
    %3 = vector.broadcast %2 : vector<1x1x8xf32> to vector<2x64x8xf32>
    %4 = arith.mulf %1, %3 : vector<2x64x8xf32>
    %c0_5 = arith.constant 0 : index
    %c0_6 = arith.constant 0 : index
    %c0_7 = arith.constant 0 : index
    %5 = vector.load %arg3[%c0_5, %c0_6, %c0_7] : memref<1x1x8xf32, #tpu.memory_space<vmem>>, vector<1x1x8xf32>
    %6 = vector.broadcast %5 : vector<1x1x8xf32> to vector<2x64x8xf32>
    %7 = arith.addf %4, %6 : vector<2x64x8xf32>
    %8 = arith.truncf %7 : vector<2x64x8xf32> to vector<2x64x8xbf16>
    %c0_8 = arith.constant 0 : index
    %c0_9 = arith.constant 0 : index
    %c0_10 = arith.constant 0 : index
    %9 = vector.load %arg4[%c0_8, %c0_9, %c0_10] : memref<2x64x8xbf16, #tpu.memory_space<vmem>>, vector<2x64x8xbf16>
    tpu.vector_store %arg4[%c0_8, %c0_9, %c0_10], %8 {strides = array<i32>} : memref<2x64x8xbf16, #tpu.memory_space<vmem>>, vector<2x64x8xbf16>,
    return
  }
  func.func @transform_0(%arg0: i32) -> (i32, i32, i32) {
    %c0_i32 = arith.constant 0 : i32
    %c0_i32_0 = arith.constant 0 : i32
    %c0_i32_1 = arith.constant 0 : i32
    return %arg0, %c0_i32, %c0_i32_0 : i32, i32, i32
  }
  func.func @transform_1(%arg0: i32) -> (i32, i32, i32) {
    %c0_i32 = arith.constant 0 : i32
    %c0_i32_0 = arith.constant 0 : i32
    %c0_i32_1 = arith.constant 0 : i32
    %c0_i32_2 = arith.constant 0 : i32
    return %c0_i32, %c0_i32_0, %c0_i32_1 : i32, i32, i32
  }
  func.func @transform_2(%arg0: i32) -> (i32, i32, i32) {
    %c0_i32 = arith.constant 0 : i32
    %c0_i32_0 = arith.constant 0 : i32
    %c0_i32_1 = arith.constant 0 : i32
    %c0_i32_2 = arith.constant 0 : i32
    return %c0_i32, %c0_i32_0, %c0_i32_1 : i32, i32, i32
  }
  func.func @transform_3(%arg0: i32) -> (i32, i32, i32) {
    %c0_i32 = arith.constant 0 : i32
    %c0_i32_0 = arith.constant 0 : i32
    %c0_i32_1 = arith.constant 0 : i32
    return %arg0, %c0_i32, %c0_i32_0 : i32, i32, i32
  }
}

module attributes {stable_mosaic.version = 11 : i64} {
  func.func @_conv_act_kernel(%arg0: i32, %arg1: memref<1x10x10x8xbf16, #tpu.memory_space<vmem>>, %arg2: memref<72x8xbf16, #tpu.memory_space<vmem>>, %arg3: memref<1x8xf32, #tpu.memory_space<vmem>>, %arg4: memref<1x64x8xbf16, #tpu.memory_space<vmem>>, %arg5: memref<1x1x8xf32, #tpu.memory_space<vmem>>, %arg6: memref<1x1x8xf32, #tpu.memory_space<vmem>>) attributes {dimension_semantics = [#tpu.dimension_semantics<parallel>], iteration_bounds = array<i64: 2>, scalar_prefetch = 0 : i64, scratch_operands = 0 : i64, tpu.core_type = #tpu.core_type<tc>, window_params = [{transform_indices = @transform_0, window_bounds = array<i64: 1, 10, 10, 8>}, {pipeline_mode = #tpu.pipeline_mode<synchronous>, transform_indices = @transform_1, window_bounds = array<i64: 72, 8>}, {pipeline_mode = #tpu.pipeline_mode<synchronous>, transform_indices = @transform_2, window_bounds = array<i64: 1, 8>}, {transform_indices = @transform_3, window_bounds = array<i64: 1, 64, 8>}, {transform_indices = @transform_4, window_bounds = array<i64: 1, 1, 8>}, {transform_indices = @transform_5, window_bounds = array<i64: 1, 1, 8>}]} {
    %c0 = arith.constant 0 : index
    %c0_0 = arith.constant 0 : index
    %c0_1 = arith.constant 0 : index
    %c0_2 = arith.constant 0 : index
    %0 = vector.load %arg1[%c0, %c0_0, %c0_1, %c0_2] : memref<1x10x10x8xbf16, #tpu.memory_space<vmem>>, vector<1x8x8x8xbf16>
    %1 = vector.shape_cast %0 : vector<1x8x8x8xbf16> to vector<8x8x8xbf16>
    %c0_3 = arith.constant 0 : index
    %c0_4 = arith.constant 0 : index
    %c1 = arith.constant 1 : index
    %c0_5 = arith.constant 0 : index
    %2 = vector.load %arg1[%c0_3, %c0_4, %c1, %c0_5] : memref<1x10x10x8xbf16, #tpu.memory_space<vmem>>, vector<1x8x8x8xbf16>
    %3 = vector.shape_cast %2 : vector<1x8x8x8xbf16> to vector<8x8x8xbf16>
    %c0_6 = arith.constant 0 : index
    %c0_7 = arith.constant 0 : index
    %c2 = arith.constant 2 : index
    %c0_8 = arith.constant 0 : index
    %4 = vector.load %arg1[%c0_6, %c0_7, %c2, %c0_8] : memref<1x10x10x8xbf16, #tpu.memory_space<vmem>>, vector<1x8x8x8xbf16>
    %5 = vector.shape_cast %4 : vector<1x8x8x8xbf16> to vector<8x8x8xbf16>
    %c0_9 = arith.constant 0 : index
    %c1_10 = arith.constant 1 : index
    %c0_11 = arith.constant 0 : index
    %c0_12 = arith.constant 0 : index
    %6 = vector.load %arg1[%c0_9, %c1_10, %c0_11, %c0_12] : memref<1x10x10x8xbf16, #tpu.memory_space<vmem>>, vector<1x8x8x8xbf16>
    %7 = vector.shape_cast %6 : vector<1x8x8x8xbf16> to vector<8x8x8xbf16>
    %c0_13 = arith.constant 0 : index
    %c1_14 = arith.constant 1 : index
    %c1_15 = arith.constant 1 : index
    %c0_16 = arith.constant 0 : index
    %8 = vector.load %arg1[%c0_13, %c1_14, %c1_15, %c0_16] : memref<1x10x10x8xbf16, #tpu.memory_space<vmem>>, vector<1x8x8x8xbf16>
    %9 = vector.shape_cast %8 : vector<1x8x8x8xbf16> to vector<8x8x8xbf16>
    %c0_17 = arith.constant 0 : index
    %c1_18 = arith.constant 1 : index
    %c2_19 = arith.constant 2 : index
    %c0_20 = arith.constant 0 : index
    %10 = vector.load %arg1[%c0_17, %c1_18, %c2_19, %c0_20] : memref<1x10x10x8xbf16, #tpu.memory_space<vmem>>, vector<1x8x8x8xbf16>
    %11 = vector.shape_cast %10 : vector<1x8x8x8xbf16> to vector<8x8x8xbf16>
    %c0_21 = arith.constant 0 : index
    %c2_22 = arith.constant 2 : index
    %c0_23 = arith.constant 0 : index
    %c0_24 = arith.constant 0 : index
    %12 = vector.load %arg1[%c0_21, %c2_22, %c0_23, %c0_24] : memref<1x10x10x8xbf16, #tpu.memory_space<vmem>>, vector<1x8x8x8xbf16>
    %13 = vector.shape_cast %12 : vector<1x8x8x8xbf16> to vector<8x8x8xbf16>
    %c0_25 = arith.constant 0 : index
    %c2_26 = arith.constant 2 : index
    %c1_27 = arith.constant 1 : index
    %c0_28 = arith.constant 0 : index
    %14 = vector.load %arg1[%c0_25, %c2_26, %c1_27, %c0_28] : memref<1x10x10x8xbf16, #tpu.memory_space<vmem>>, vector<1x8x8x8xbf16>
    %15 = vector.shape_cast %14 : vector<1x8x8x8xbf16> to vector<8x8x8xbf16>
    %c0_29 = arith.constant 0 : index
    %c2_30 = arith.constant 2 : index
    %c2_31 = arith.constant 2 : index
    %c0_32 = arith.constant 0 : index
    %16 = vector.load %arg1[%c0_29, %c2_30, %c2_31, %c0_32] : memref<1x10x10x8xbf16, #tpu.memory_space<vmem>>, vector<1x8x8x8xbf16>
    %17 = vector.shape_cast %16 : vector<1x8x8x8xbf16> to vector<8x8x8xbf16>
    %18 = tpu.concatenate %1, %3, %5, %7, %9, %11, %13, %15, %17 in 2 : vector<8x8x8xbf16>, vector<8x8x8xbf16>, vector<8x8x8xbf16>, vector<8x8x8xbf16>, vector<8x8x8xbf16>, vector<8x8x8xbf16>, vector<8x8x8xbf16>, vector<8x8x8xbf16>, vector<8x8x8xbf16> -> vector<8x8x72xbf16>
    %19 = vector.shape_cast %18 : vector<8x8x72xbf16> to vector<64x72xbf16>
    %c0_33 = arith.constant 0 : index
    %c0_34 = arith.constant 0 : index
    %20 = vector.load %arg2[%c0_33, %c0_34] : memref<72x8xbf16, #tpu.memory_space<vmem>>, vector<72x8xbf16>
    %cst = arith.constant dense<0.000000e+00> : vector<64x8xf32>
    %21 = tpu.matmul %19, %20, %cst {dimension_numbers = #tpu.dot_dimension_numbers<[1], [0], [0], [1], [0, 0, 1, 1], [], []>} : vector<64x72xbf16>, vector<72x8xbf16>, vector<64x8xf32> -> vector<64x8xf32>
    %c0_35 = arith.constant 0 : index
    %c0_36 = arith.constant 0 : index
    %22 = vector.load %arg3[%c0_35, %c0_36] : memref<1x8xf32, #tpu.memory_space<vmem>>, vector<1x8xf32>
    %23 = vector.broadcast %22 : vector<1x8xf32> to vector<64x8xf32>
    %24 = arith.addf %21, %23 : vector<64x8xf32>
    %cst_37 = arith.constant 0.000000e+00 : f32
    %25 = vector.broadcast %cst_37 : f32 to vector<64x8xf32>
    %26 = arith.cmpf oge, %24, %25 : vector<64x8xf32>
    %cst_38 = arith.constant 1.000000e-01 : f32
    %27 = vector.broadcast %cst_38 : f32 to vector<64x8xf32>
    %28 = arith.mulf %27, %24 : vector<64x8xf32>
    %29 = arith.select %26, %24, %28 : vector<64x8xi1>, vector<64x8xf32>
    %30 = arith.truncf %29 : vector<64x8xf32> to vector<64x8xbf16>
    %c0_39 = arith.constant 0 : index
    %c0_40 = arith.constant 0 : index
    %c0_41 = arith.constant 0 : index
    %31 = vector.load %arg4[%c0_39, %c0_40, %c0_41] : memref<1x64x8xbf16, #tpu.memory_space<vmem>>, vector<1x64x8xbf16>
    %32 = vector.shape_cast %31 : vector<1x64x8xbf16> to vector<64x8xbf16>
    %33 = vector.shape_cast %30 : vector<64x8xbf16> to vector<1x64x8xbf16>
    tpu.vector_store %arg4[%c0_39, %c0_40, %c0_41], %33 {strides = array<i32>} : memref<1x64x8xbf16, #tpu.memory_space<vmem>>, vector<1x64x8xbf16>,
    %cst_42 = arith.constant dense<0.000000e+00> : vector<8xf32>
    %34 = vector.multi_reduction <add>, %29, %cst_42 [0] : vector<64x8xf32> to vector<8xf32>
    %35 = vector.shape_cast %34 : vector<8xf32> to vector<1x1x8xf32>
    %c0_43 = arith.constant 0 : index
    %c0_44 = arith.constant 0 : index
    %c0_45 = arith.constant 0 : index
    %36 = vector.load %arg5[%c0_43, %c0_44, %c0_45] : memref<1x1x8xf32, #tpu.memory_space<vmem>>, vector<1x1x8xf32>
    tpu.vector_store %arg5[%c0_43, %c0_44, %c0_45], %35 {strides = array<i32>} : memref<1x1x8xf32, #tpu.memory_space<vmem>>, vector<1x1x8xf32>,
    %37 = arith.mulf %29, %29 : vector<64x8xf32>
    %cst_46 = arith.constant dense<0.000000e+00> : vector<8xf32>
    %38 = vector.multi_reduction <add>, %37, %cst_46 [0] : vector<64x8xf32> to vector<8xf32>
    %39 = vector.shape_cast %38 : vector<8xf32> to vector<1x1x8xf32>
    %c0_47 = arith.constant 0 : index
    %c0_48 = arith.constant 0 : index
    %c0_49 = arith.constant 0 : index
    %40 = vector.load %arg6[%c0_47, %c0_48, %c0_49] : memref<1x1x8xf32, #tpu.memory_space<vmem>>, vector<1x1x8xf32>
    tpu.vector_store %arg6[%c0_47, %c0_48, %c0_49], %39 {strides = array<i32>} : memref<1x1x8xf32, #tpu.memory_space<vmem>>, vector<1x1x8xf32>,
    return
  }
  func.func @transform_0(%arg0: i32) -> (i32, i32, i32, i32) {
    %c0_i32 = arith.constant 0 : i32
    %c0_i32_0 = arith.constant 0 : i32
    %c0_i32_1 = arith.constant 0 : i32
    %c0_i32_2 = arith.constant 0 : i32
    return %arg0, %c0_i32, %c0_i32_0, %c0_i32_1 : i32, i32, i32, i32
  }
  func.func @transform_1(%arg0: i32) -> (i32, i32) {
    %c0_i32 = arith.constant 0 : i32
    %c0_i32_0 = arith.constant 0 : i32
    %c0_i32_1 = arith.constant 0 : i32
    return %c0_i32, %c0_i32_0 : i32, i32
  }
  func.func @transform_2(%arg0: i32) -> (i32, i32) {
    %c0_i32 = arith.constant 0 : i32
    %c0_i32_0 = arith.constant 0 : i32
    %c0_i32_1 = arith.constant 0 : i32
    return %c0_i32, %c0_i32_0 : i32, i32
  }
  func.func @transform_3(%arg0: i32) -> (i32, i32, i32) {
    %c0_i32 = arith.constant 0 : i32
    %c0_i32_0 = arith.constant 0 : i32
    %c0_i32_1 = arith.constant 0 : i32
    return %arg0, %c0_i32, %c0_i32_0 : i32, i32, i32
  }
  func.func @transform_4(%arg0: i32) -> (i32, i32, i32) {
    %c0_i32 = arith.constant 0 : i32
    %c0_i32_0 = arith.constant 0 : i32
    %c0_i32_1 = arith.constant 0 : i32
    return %arg0, %c0_i32, %c0_i32_0 : i32, i32, i32
  }
  func.func @transform_5(%arg0: i32) -> (i32, i32, i32) {
    %c0_i32 = arith.constant 0 : i32
    %c0_i32_0 = arith.constant 0 : i32
    %c0_i32_1 = arith.constant 0 : i32
    return %arg0, %c0_i32, %c0_i32_0 : i32, i32, i32
  }
}

</mosaic_0001>

<llo_original>
// kernel: pyramid_block.7
$region0: #{pyramid_block.7}
  #allocation0 [shape = 'u32[]', space=smem, size = 0x4, offset = 0x4, fixed_abs, tag = 'smem constant byte address 0x4 - core index']
  #allocation1 [shape = 'u32[144,128]{1,0:T(1,128)}', space=vmem, size = 0x12000, scoped, tag = 'internal scratch']
  %s0 = inlined_call_operand.vmem [shape: bf16[2,64,8], index: 0, kind: input, shape index: {}, may-alias: {0,3}]
  %s1 = inlined_call_operand.vmem [shape: f32[1,1,8], index: 1, kind: input, shape index: {}]
  %s2 = inlined_call_operand.vmem [shape: f32[1,1,8], index: 2, kind: input, shape index: {}]
  %s3 = inlined_call_operand.vmem [shape: bf16[2,64,8], index: 3, kind: output, shape index: {}, may-alias: {0,3}]
  %s4 = sld [smem:[#allocation0]]
  $region22: #{pyramid_block.7} parent=0
    _
  %s6 = ssub.s32 1, %s4
  %s7 = scalar_select 0, %s6, %s4
  // Predicated region
  $region2: #{pyramid_block.7} parent=0 // pred_check
    _
  $region3: #{pyramid_block.7} parent=0 // pred_check_branch
    %9 = sbr.rel (0) target = $region5
  $region4: #{pyramid_block.7} parent=0 // pred_region
    _
  $region5: #{pyramid_block.7} parent=0 // pred_fallthru
    _
  // Predicated region
  $region6: #{pyramid_block.7} parent=0 // pred_check
    _
  $region7: #{pyramid_block.7} parent=0 // pred_check_branch
    %11 = sbr.rel (0) target = $region9
  $region8: #{pyramid_block.7} parent=0 // pred_region
    _
  $region9: #{pyramid_block.7} parent=0 // pred_fallthru
    _
  // Predicated region
  $region10: #{pyramid_block.7} parent=0 // pred_check
    _
  $region11: #{pyramid_block.7} parent=0 // pred_check_branch
    %13 = sbr.rel (0) target = $region13
  $region12: #{pyramid_block.7} parent=0 // pred_region
    _
  $region13: #{pyramid_block.7} parent=0 // pred_fallthru
    _
  %v14 = vld [vmem:[%s0] sm:$0xf]
  %v15 = vld [vmem:[%s0 + $0x4] sm:$0xf]
  %v16 = vld [vmem:[%s0 + $0x8] sm:$0xf]
  %v17 = vld [vmem:[%s0 + $0xc] sm:$0xf]
  %v18 = vld [vmem:[%s0 + $0x10] sm:$0xf]
  %v19 = vld [vmem:[%s0 + $0x14] sm:$0xf]
  %v20 = vld [vmem:[%s0 + $0x18] sm:$0xf]
  %v21 = vld [vmem:[%s0 + $0x1c] sm:$0xf]
  %v22 = vld [vmem:[%s0 + $0x20] sm:$0xf]
  %v23 = vld [vmem:[%s0 + $0x24] sm:$0xf]
  %v24 = vld [vmem:[%s0 + $0x28] sm:$0xf]
  %v25 = vld [vmem:[%s0 + $0x2c] sm:$0xf]
  %v26 = vld [vmem:[%s0 + $0x30] sm:$0xf]
  %v27 = vld [vmem:[%s0 + $0x34] sm:$0xf]
  %v28 = vld [vmem:[%s0 + $0x38] sm:$0xf]
  %v29 = vld [vmem:[%s0 + $0x3c] sm:$0xf]
  %v30 = vunpack.c.l.bf16 %v14
  %v31 = vunpack.c.l.bf16 %v15
  %v32 = vunpack.c.l.bf16 %v16
  %v33 = vunpack.c.l.bf16 %v17
  %v34 = vunpack.c.l.bf16 %v18
  %v35 = vunpack.c.l.bf16 %v19
  %v36 = vunpack.c.l.bf16 %v20
  %v37 = vunpack.c.l.bf16 %v21
  %v38 = vunpack.c.l.bf16 %v22
  %v39 = vunpack.c.l.bf16 %v23
  %v40 = vunpack.c.l.bf16 %v24
  %v41 = vunpack.c.l.bf16 %v25
  %v42 = vunpack.c.l.bf16 %v26
  %v43 = vunpack.c.l.bf16 %v27
  %v44 = vunpack.c.l.bf16 %v28
  %v45 = vunpack.c.l.bf16 %v29
  %v46 = vld [vmem:[%s1] sm:$0x1]
  %v48 = vlaneseq
  %v49 = vshrl.u32 %v48, 7
  %v50 = vsub.s32 0, %v49
  %v51 = vrot.slane %v46, %v50
  %v53 = vmul.f32 %v30, %v51
  %v54 = vmul.f32 %v31, %v51
  %v55 = vmul.f32 %v32, %v51
  %v56 = vmul.f32 %v33, %v51
  %v57 = vmul.f32 %v34, %v51
  %v58 = vmul.f32 %v35, %v51
  %v59 = vmul.f32 %v36, %v51
  %v60 = vmul.f32 %v37, %v51
  %v61 = vmul.f32 %v38, %v51
  %v62 = vmul.f32 %v39, %v51
  %v63 = vmul.f32 %v40, %v51
  %v64 = vmul.f32 %v41, %v51
  %v65 = vmul.f32 %v42, %v51
  %v66 = vmul.f32 %v43, %v51
  %v67 = vmul.f32 %v44, %v51
  %v68 = vmul.f32 %v45, %v51
  %v69 = vld [vmem:[%s2] sm:$0x1]
  %v71 = vlaneseq
  %v72 = vshrl.u32 %v71, 7
  %v73 = vsub.s32 0, %v72
  %v74 = vrot.slane %v69, %v73
  %v76 = vadd.f32 %v53, %v74
  %v77 = vadd.f32 %v54, %v74
  %v78 = vadd.f32 %v55, %v74
  %v79 = vadd.f32 %v56, %v74
  %v80 = vadd.f32 %v57, %v74
  %v81 = vadd.f32 %v58, %v74
  %v82 = vadd.f32 %v59, %v74
  %v83 = vadd.f32 %v60, %v74
  %v84 = vadd.f32 %v61, %v74
  %v85 = vadd.f32 %v62, %v74
  %v86 = vadd.f32 %v63, %v74
  %v87 = vadd.f32 %v64, %v74
  %v88 = vadd.f32 %v65, %v74
  %v89 = vadd.f32 %v66, %v74
  %v90 = vadd.f32 %v67, %v74
  %v91 = vadd.f32 %v68, %v74
  %v92 = vpack.c.bf16 %v77, %v76
  %v93 = vpack.c.bf16 %v79, %v78
  %v94 = vpack.c.bf16 %v81, %v80
  %v95 = vpack.c.bf16 %v83, %v82
  %v96 = vpack.c.bf16 %v85, %v84
  %v97 = vpack.c.bf16 %v87, %v86
  %v98 = vpack.c.bf16 %v89, %v88
  %v99 = vpack.c.bf16 %v91, %v90
  %v108 = vunpack.c.l.b16 %v92
  %v109 = vunpack.c.h.b16 %v92
  %v110 = vunpack.c.l.b16 %v93
  %v111 = vunpack.c.h.b16 %v93
  %v112 = vunpack.c.l.b16 %v94
  %v113 = vunpack.c.h.b16 %v94
  %v114 = vunpack.c.l.b16 %v95
  %v115 = vunpack.c.h.b16 %v95
  %v116 = vunpack.c.l.b16 %v96
  %v117 = vunpack.c.h.b16 %v96
  %v118 = vunpack.c.l.b16 %v97
  %v119 = vunpack.c.h.b16 %v97
  %v120 = vunpack.c.l.b16 %v98
  %v121 = vunpack.c.h.b16 %v98
  %v122 = vunpack.c.l.b16 %v99
  %v123 = vunpack.c.h.b16 %v99
  %v124 = vpack.c.b16 %v108, %v108
  %v125 = vpack.c.b16 %v109, %v109
  %v126 = vpack.c.b16 %v110, %v110
  %v127 = vpack.c.b16 %v111, %v111
  %v128 = vpack.c.b16 %v112, %v112
  %v129 = vpack.c.b16 %v113, %v113
  %v130 = vpack.c.b16 %v114, %v114
  %v131 = vpack.c.b16 %v115, %v115
  %v132 = vpack.c.b16 %v116, %v116
  %v133 = vpack.c.b16 %v117, %v117
  %v134 = vpack.c.b16 %v118, %v118
  %v135 = vpack.c.b16 %v119, %v119
  %v136 = vpack.c.b16 %v120, %v120
  %v137 = vpack.c.b16 %v121, %v121
  %v138 = vpack.c.b16 %v122, %v122
  %v139 = vpack.c.b16 %v123, %v123
  %vm156 = vcmask 60416
  %157 = vst.msk [vmem:[%s3] sm:$0xf] %vm156, %v124
  %158 = vst.msk [vmem:[%s3 + $0x4] sm:$0xf] %vm156, %v125
  %159 = vst.msk [vmem:[%s3 + $0x8] sm:$0xf] %vm156, %v126
  %160 = vst.msk [vmem:[%s3 + $0xc] sm:$0xf] %vm156, %v127
  %161 = vst.msk [vmem:[%s3 + $0x10] sm:$0xf] %vm156, %v128
  %162 = vst.msk [vmem:[%s3 + $0x14] sm:$0xf] %vm156, %v129
  %163 = vst.msk [vmem:[%s3 + $0x18] sm:$0xf] %vm156, %v130
  %164 = vst.msk [vmem:[%s3 + $0x1c] sm:$0xf] %vm156, %v131
  %165 = vst.msk [vmem:[%s3 + $0x20] sm:$0xf] %vm156, %v132
  %166 = vst.msk [vmem:[%s3 + $0x24] sm:$0xf] %vm156, %v133
  %167 = vst.msk [vmem:[%s3 + $0x28] sm:$0xf] %vm156, %v134
  %168 = vst.msk [vmem:[%s3 + $0x2c] sm:$0xf] %vm156, %v135
  %169 = vst.msk [vmem:[%s3 + $0x30] sm:$0xf] %vm156, %v136
  %170 = vst.msk [vmem:[%s3 + $0x34] sm:$0xf] %vm156, %v137
  %171 = vst.msk [vmem:[%s3 + $0x38] sm:$0xf] %vm156, %v138
  %172 = vst.msk [vmem:[%s3 + $0x3c] sm:$0xf] %vm156, %v139
  // Predicated region
  $region14: #{pyramid_block.7} parent=0 // pred_check
    _
  $region15: #{pyramid_block.7} parent=0 // pred_check_branch
    %174 = sbr.rel (0) target = $region17
  $region16: #{pyramid_block.7} parent=0 // pred_region
    _
  $region17: #{pyramid_block.7} parent=0 // pred_fallthru
    _
  // Predicated region
  $region18: #{pyramid_block.7} parent=0 // pred_check
    _
  $region19: #{pyramid_block.7} parent=0 // pred_check_branch
    %176 = sbr.rel (0) target = $region21
  $region20: #{pyramid_block.7} parent=0 // pred_region
    _
  $region21: #{pyramid_block.7} parent=0 // pred_fallthru
    _

// kernel: pyramid_block.6
$region0: #{pyramid_block.6}
  #allocation0 [shape = 'u32[]', space=smem, size = 0x4, offset = 0x4, fixed_abs, tag = 'smem constant byte address 0x4 - core index']
  #allocation1 [shape = 'u32[144,128]{1,0:T(1,128)}', space=vmem, size = 0x12000, scoped, tag = 'internal scratch']
  %s0 = inlined_call_operand.vmem [shape: bf16[2,36,9,4], index: 0, kind: input, shape index: {}]
  %s1 = inlined_call_operand.vmem [shape: bf16[36,8], index: 1, kind: input, shape index: {}]
  %s2 = inlined_call_operand.vmem [shape: f32[1,8], index: 2, kind: input, shape index: {}]
  %s3 = inlined_call_operand.vmem [shape: bf16[2,64,8], index: 3, kind: output, shape index: {0}]
  %s4 = inlined_call_operand.vmem [shape: f32[2,1,8], index: 4, kind: output, shape index: {1}]
  %s5 = inlined_call_operand.vmem [shape: f32[2,1,8], index: 5, kind: output, shape index: {2}]
  %6 = xla_tuple %s3, %s4, %s5
  %s7 = sld [smem:[#allocation0]]
  $region61: #{pyramid_block.6} parent=0
    _
  %s9 = ssub.s32 1, %s7
  %s10 = scalar_select 0, %s9, %s7
  loop: start=0, step=1, limit=4
  $region2: #{pyramid_block.6} parent=0 // loop_pre_header
    _
  $region3: #{pyramid_block.6} parent=0 // loop_header
    %s12 = sphi 0, %s16
    %p13 = scmp.ge.s32.totalorder %s12, 4
    %s22 = sphi 0, %s24
    %s25 = sphi 0, %s22
    %s26 = sphi 0, %s25
    %s42 = sphi 0, %s26
    %s46 = sphi 0, %s46
    %s48 = sphi 0, %s46
    %s49 = sphi 0, %s48
    %s63 = sphi 0, %s49
    %s67 = sphi 0, %s67
    %s69 = sphi 0, %s67
    %s70 = sphi 0, %s69
    %s84 = sphi 0, %s70
    %s90 = sphi 0, %s92
    %s93 = sphi 0, %s90
    %s94 = sphi 0, %s93
    %s110 = sphi 0, %s94
    %s116 = sphi 0, %s118
    %s119 = sphi 0, %s116
    %s120 = sphi 0, %s119
    %s136 = sphi 0, %s120
    %s142 = sphi 0, %s144
    %s145 = sphi 0, %s142
    %s146 = sphi 0, %s145
    %s162 = sphi 0, %s146
  $region4: #{pyramid_block.6} parent=0 // loop_header_branch
    %15 = sbr.rel (%p13) target = $region8
  $region5: #{pyramid_block.6} parent=0 // loop_body
    %s17 = ssub.s32 %s12, 1
    %s18 = ssub.s32 %s12, 2
    %s19 = sadd.s32 %s12, 1
    %s20 = ssub.s32 %s12, %s19
    %p21 = scmp.eq.s32.totalorder %s20, 0
    %s23 = sadd.s32 %s22, 1
    %s24 = scalar_select %p21, %s22, %s23
    %p27 = pneg %p21
    %p28 = scmp.eq.s32.totalorder %s12, 1
    %p29 = por %p27, %p28
    %p30 = scmp.ne.s32.totalorder %s22, %s25
    %p31 = scmp.eq.s32.totalorder %s12, 0
    %p32 = por %p30, %p31
    %p33 = scmp.ne.s32.totalorder %s22, %s25
    %p34 = scmp.eq.s32.totalorder %s17, 1
    %p35 = por %p33, %p34
    %p36 = scmp.ne.s32.totalorder %s25, %s26
    %p37 = scmp.eq.s32.totalorder %s17, 0
    %p38 = por %p36, %p37
    %p39 = scmp.ne.s32.totalorder %s25, %s26
    %p40 = scmp.eq.s32.totalorder %s18, 1
    %p41 = por %p39, %p40
    %p43 = scmp.ne.s32.totalorder %s26, %s42
    %p44 = scmp.eq.s32.totalorder %s18, 0
    %p45 = por %p43, %p44
    %s47 = sadd.s32 %s46, 1
    %p50 = scmp.eq.s32.totalorder %s12, 1
    %p51 = scmp.ne.s32.totalorder %s46, %s48
    %p52 = scmp.eq.s32.totalorder %s12, 0
    %p53 = por %p51, %p52
    %p54 = scmp.ne.s32.totalorder %s46, %s48
    %p55 = scmp.eq.s32.totalorder %s17, 1
    %p56 = por %p54, %p55
    %p57 = scmp.ne.s32.totalorder %s48, %s49
    %p58 = scmp.eq.s32.totalorder %s17, 0
    %p59 = por %p57, %p58
    %p60 = scmp.ne.s32.totalorder %s48, %s49
    %p61 = scmp.eq.s32.totalorder %s18, 1
    %p62 = por %p60, %p61
    %p64 = scmp.ne.s32.totalorder %s49, %s63
    %p65 = scmp.eq.s32.totalorder %s18, 0
    %p66 = por %p64, %p65
    %s68 = sadd.s32 %s67, 1
    %p71 = scmp.eq.s32.totalorder %s12, 1
    %p72 = scmp.ne.s32.totalorder %s67, %s69
    %p73 = scmp.eq.s32.totalorder %s12, 0
    %p74 = por %p72, %p73
    %p75 = scmp.ne.s32.totalorder %s67, %s69
    %p76 = scmp.eq.s32.totalorder %s17, 1
    %p77 = por %p75, %p76
    %p78 = scmp.ne.s32.totalorder %s69, %s70
    %p79 = scmp.eq.s32.totalorder %s17, 0
    %p80 = por %p78, %p79
    %p81 = scmp.ne.s32.totalorder %s69, %s70
    %p82 = scmp.eq.s32.totalorder %s18, 1
    %p83 = por %p81, %p82
    %p85 = scmp.ne.s32.totalorder %s70, %s84
    %p86 = scmp.eq.s32.totalorder %s18, 0
    %p87 = por %p85, %p86
    %s88 = ssub.s32 %s12, %s19
    %p89 = scmp.eq.s32.totalorder %s88, 0
    %s91 = sadd.s32 %s90, 1
    %s92 = scalar_select %p89, %s90, %s91
    %p95 = pneg %p89
    %p96 = scmp.eq.s32.totalorder %s12, 1
    %p97 = por %p95, %p96
    %p98 = scmp.ne.s32.totalorder %s90, %s93
    %p99 = scmp.eq.s32.totalorder %s12, 0
    %p100 = por %p98, %p99
    %p101 = scmp.ne.s32.totalorder %s90, %s93
    %p102 = scmp.eq.s32.totalorder %s17, 1
    %p103 = por %p101, %p102
    %p104 = scmp.ne.s32.totalorder %s93, %s94
    %p105 = scmp.eq.s32.totalorder %s17, 0
    %p106 = por %p104, %p105
    %p107 = scmp.ne.s32.totalorder %s93, %s94
    %p108 = scmp.eq.s32.totalorder %s18, 1
    %p109 = por %p107, %p108
    %p111 = scmp.ne.s32.totalorder %s94, %s110
    %p112 = scmp.eq.s32.totalorder %s18, 0
    %p113 = por %p111, %p112
    %s114 = ssub.s32 %s12, %s19
    %p115 = scmp.eq.s32.totalorder %s114, 0
    %s117 = sadd.s32 %s116, 1
    %s118 = scalar_select %p115, %s116, %s117
    %p121 = pneg %p115
    %p122 = scmp.eq.s32.totalorder %s12, 1
    %p123 = por %p121, %p122
    %p124 = scmp.ne.s32.totalorder %s116, %s119
    %p125 = scmp.eq.s32.totalorder %s12, 0
    %p126 = por %p124, %p125
    %p127 = scmp.ne.s32.totalorder %s116, %s119
    %p128 = scmp.eq.s32.totalorder %s17, 1
    %p129 = por %p127, %p128
    %p130 = scmp.ne.s32.totalorder %s119, %s120
    %p131 = scmp.eq.s32.totalorder %s17, 0
    %p132 = por %p130, %p131
    %p133 = scmp.ne.s32.totalorder %s119, %s120
    %p134 = scmp.eq.s32.totalorder %s18, 1
    %p135 = por %p133, %p134
    %p137 = scmp.ne.s32.totalorder %s120, %s136
    %p138 = scmp.eq.s32.totalorder %s18, 0
    %p139 = por %p137, %p138
    %s140 = ssub.s32 %s12, %s19
    %p141 = scmp.eq.s32.totalorder %s140, 0
    %s143 = sadd.s32 %s142, 1
    %s144 = scalar_select %p141, %s142, %s143
    %p147 = pneg %p141
    %p148 = scmp.eq.s32.totalorder %s12, 1
    %p149 = por %p147, %p148
    %p150 = scmp.ne.s32.totalorder %s142, %s145
    %p151 = scmp.eq.s32.totalorder %s12, 0
    %p152 = por %p150, %p151
    %p153 = scmp.ne.s32.totalorder %s142, %s145
    %p154 = scmp.eq.s32.totalorder %s17, 1
    %p155 = por %p153, %p154
    %p156 = scmp.ne.s32.totalorder %s145, %s146
    %p157 = scmp.eq.s32.totalorder %s17, 0
    %p158 = por %p156, %p157
    %p159 = scmp.ne.s32.totalorder %s145, %s146
    %p160 = scmp.eq.s32.totalorder %s18, 1
    %p161 = por %p159, %p160
    %p163 = scmp.ne.s32.totalorder %s146, %s162
    %p164 = scmp.eq.s32.totalorder %s18, 0
    %p165 = por %p163, %p164
    %p166 = scmp.le.s32.totalorder 1, %s12
    %p167 = scmp.lt.s32.totalorder %s12, 3
    %p168 = pnand %p166, %p167
    %p169 = pneg %p168
    // Predicated region
    $region9: #{pyramid_block.6} parent=5 // pred_check
      _
    $region10: #{pyramid_block.6} parent=5 // pred_check_branch
      %171 = sbr.rel (%p168) target = $region12
    $region11: #{pyramid_block.6} parent=5 // pred_region
      %s172 = ssub.s32 %s12, 1
      // Predicated region
      $region13: #{pyramid_block.6} parent=11 // pred_check
        %p173 = pneg %p59
      $region14: #{pyramid_block.6} parent=11 // pred_check_branch
        %175 = sbr.rel (%p173) target = $region16
      $region15: #{pyramid_block.6} parent=11 // pred_region
        _
      $region16: #{pyramid_block.6} parent=11 // pred_fallthru
        _
      // Predicated region
      $region17: #{pyramid_block.6} parent=11 // pred_check
        %p176 = pneg %p80
      $region18: #{pyramid_block.6} parent=11 // pred_check_branch
        %178 = sbr.rel (%p176) target = $region20
      $region19: #{pyramid_block.6} parent=11 // pred_region
        _
      $region20: #{pyramid_block.6} parent=11 // pred_fallthru
        _
    $region12: #{pyramid_block.6} parent=5 // pred_fallthru
      _
    %p179 = scmp.lt.s32.totalorder %s12, 2
    // Predicated region
    $region21: #{pyramid_block.6} parent=5 // pred_check
      %p180 = pneg %p179
    $region22: #{pyramid_block.6} parent=5 // pred_check_branch
      %182 = sbr.rel (%p180) target = $region24
    $region23: #{pyramid_block.6} parent=5 // pred_region
      // Predicated region
      $region25: #{pyramid_block.6} parent=23 // pred_check
        %p183 = pneg %p32
      $region26: #{pyramid_block.6} parent=23 // pred_check_branch
        %185 = sbr.rel (%p183) target = $region28
      $region27: #{pyramid_block.6} parent=23 // pred_region
        %p186 = scmp.lt.s32.totalorder %s12, 1
        %s187 = scalar_select %p186, %s12, 1
        %s188 = smul.addr %s187, 72
        %s189 = smul.addr %s188, 4
        %s190 = scalar_lea.vmem %s0, %s189
      $region28: #{pyramid_block.6} parent=23 // pred_fallthru
        _
    $region24: #{pyramid_block.6} parent=5 // pred_fallthru
      _
    %p191 = scmp.le.s32.totalorder 1, %s12
    %p192 = scmp.lt.s32.totalorder %s12, 3
    %p193 = pnand %p191, %p192
    %p194 = pneg %p193
    // Predicated region
    $region29: #{pyramid_block.6} parent=5 // pred_check
      _
    $region30: #{pyramid_block.6} parent=5 // pred_check_branch
      %196 = sbr.rel (%p193) target = $region32
    $region31: #{pyramid_block.6} parent=5 // pred_region
      %s197 = ssub.s32 %s12, 1
      %p198 = scmp.lt.s32.totalorder %s17, 1
      %s199 = scalar_select %p198, %s17, 1
      %s200 = smul.addr %s199, 72
      %s201 = smul.addr %s200, 4
      %s202 = scalar_lea.vmem %s0, %s201
      %p203 = pneg %p38
      %p204 = pneg %p35
      %p205 = pneg %p59
      %p206 = pneg %p56
      %p207 = pneg %p80
      %p208 = pneg %p77
      %p209 = pneg %p106
      %p210 = pneg %p103
      %p211 = scmp.lt.s32.totalorder %s17, 1
      %s212 = scalar_select %p211, %s17, 1
      %s213 = smul.addr %s212, 8
      %s214 = smul.addr %s213, 4
      %s215 = scalar_lea.vmem %s3, %s214
      %p216 = pneg %p132
      %p217 = pneg %p129
      %p218 = scmp.lt.s32.totalorder %s17, 1
      %s219 = scalar_select %p218, %s17, 1
      %s220 = scalar_lea.vmem %s4, %s219
      %p221 = pneg %p158
      %p222 = pneg %p155
      %p223 = scmp.lt.s32.totalorder %s17, 1
      %s224 = scalar_select %p223, %s17, 1
      %s225 = scalar_lea.vmem %s5, %s224
      %p226 = scmp.lt.s32.totalorder %s17, 1
      %s227 = scalar_select %p226, %s17, 1
      %s228 = smul.addr %s227, 72
      %s229 = smul.addr %s228, 4
      %s230 = scalar_lea.vmem %s0, %s229
      %p231 = scmp.lt.s32.totalorder %s17, 1
      %s232 = scalar_select %p231, %s17, 1
      %s233 = smul.addr %s232, 8
      %s234 = smul.addr %s233, 4
      %s235 = scalar_lea.vmem %s3, %s234
      %p236 = scmp.lt.s32.totalorder %s17, 1
      %s237 = scalar_select %p236, %s17, 1
      %s238 = scalar_lea.vmem %s4, %s237
      %p239 = scmp.lt.s32.totalorder %s17, 1
      %s240 = scalar_select %p239, %s17, 1
      %s241 = scalar_lea.vmem %s5, %s240
      %v243 = vld [vmem:[%s230] sm:$0xf]
      %v244 = vld [vmem:[%s230 + $0x8] sm:$0xf]
      %v245 = vld [vmem:[%s230 + $0x10] sm:$0xf]
      %v246 = vld [vmem:[%s230 + $0x18] sm:$0xf]
      %v247 = vld [vmem:[%s230 + $0x20] sm:$0xf]
      %v248 = vld [vmem:[%s230 + $0x28] sm:$0xf]
      %v249 = vld [vmem:[%s230 + $0x30] sm:$0xf]
      %v250 = vld [vmem:[%s230 + $0x38] sm:$0xf]
      %s251 = scalar_lea.vmem %s230, 72
      %v252 = vld [vmem:[%s251] sm:$0xf]
      %v253 = vld [vmem:[%s251 + $0x8] sm:$0xf]
      %v254 = vld [vmem:[%s251 + $0x10] sm:$0xf]
      %v255 = vld [vmem:[%s251 + $0x18] sm:$0xf]
      %v256 = vld [vmem:[%s251 + $0x20] sm:$0xf]
      %v257 = vld [vmem:[%s251 + $0x28] sm:$0xf]
      %v258 = vld [vmem:[%s251 + $0x30] sm:$0xf]
      %v259 = vld [vmem:[%s251 + $0x38] sm:$0xf]
      %v260 = vld [vmem:[%s230 + $0x4] sm:$0x1]
      %v261 = vld [vmem:[%s230 + $0xc] sm:$0x1]
      %v262 = vld [vmem:[%s230 + $0x14] sm:$0x1]
      %v263 = vld [vmem:[%s230 + $0x1c] sm:$0x1]
      %v264 = vld [vmem:[%s230 + $0x24] sm:$0x1]
      %v265 = vld [vmem:[%s230 + $0x2c] sm:$0x1]
      %v266 = vld [vmem:[%s230 + $0x34] sm:$0x1]
      %v267 = vld [vmem:[%s230 + $0x3c] sm:$0x1]
      %s268 = scalar_lea.vmem %s230, 144
      %v269 = vld [vmem:[%s268] sm:$0xf]
      %v270 = vld [vmem:[%s268 + $0x8] sm:$0xf]
      %v271 = vld [vmem:[%s268 + $0x10] sm:$0xf]
      %v272 = vld [vmem:[%s268 + $0x18] sm:$0xf]
      %v273 = vld [vmem:[%s268 + $0x20] sm:$0xf]
      %v274 = vld [vmem:[%s268 + $0x28] sm:$0xf]
      %v275 = vld [vmem:[%s268 + $0x30] sm:$0xf]
      %v276 = vld [vmem:[%s268 + $0x38] sm:$0xf]
      %s277 = scalar_lea.vmem %s230, 216
      %v278 = vld [vmem:[%s277] sm:$0xf]
      %v279 = vld [vmem:[%s277 + $0x8] sm:$0xf]
      %v280 = vld [vmem:[%s277 + $0x10] sm:$0xf]
      %v281 = vld [vmem:[%s277 + $0x18] sm:$0xf]
      %v282 = vld [vmem:[%s277 + $0x20] sm:$0xf]
      %v283 = vld [vmem:[%s277 + $0x28] sm:$0xf]
      %v284 = vld [vmem:[%s277 + $0x30] sm:$0xf]
      %v285 = vld [vmem:[%s277 + $0x38] sm:$0xf]
      %v286 = vld [vmem:[%s268 + $0x4] sm:$0x1]
      %v287 = vld [vmem:[%s268 + $0xc] sm:$0x1]
      %v288 = vld [vmem:[%s268 + $0x14] sm:$0x1]
      %v289 = vld [vmem:[%s268 + $0x1c] sm:$0x1]
      %v290 = vld [vmem:[%s268 + $0x24] sm:$0x1]
      %v291 = vld [vmem:[%s268 + $0x2c] sm:$0x1]
      %v292 = vld [vmem:[%s268 + $0x34] sm:$0x1]
      %v293 = vld [vmem:[%s268 + $0x3c] sm:$0x1]
      %s294 = scalar_lea.vmem %s230, 8
      %v295 = vld [vmem:[%s294] sm:$0xf]
      %v296 = vld [vmem:[%s294 + $0x8] sm:$0xf]
      %v297 = vld [vmem:[%s294 + $0x10] sm:$0xf]
      %v298 = vld [vmem:[%s294 + $0x18] sm:$0xf]
      %v299 = vld [vmem:[%s294 + $0x20] sm:$0xf]
      %v300 = vld [vmem:[%s294 + $0x28] sm:$0xf]
      %v301 = vld [vmem:[%s294 + $0x30] sm:$0xf]
      %v302 = vld [vmem:[%s294 + $0x38] sm:$0xf]
      %s303 = scalar_lea.vmem %s230, 80
      %v304 = vld [vmem:[%s303] sm:$0xf]
      %v305 = vld [vmem:[%s303 + $0x8] sm:$0xf]
      %v306 = vld [vmem:[%s303 + $0x10] sm:$0xf]
      %v307 = vld [vmem:[%s303 + $0x18] sm:$0xf]
      %v308 = vld [vmem:[%s303 + $0x20] sm:$0xf]
      %v309 = vld [vmem:[%s303 + $0x28] sm:$0xf]
      %v310 = vld [vmem:[%s303 + $0x30] sm:$0xf]
      %v311 = vld [vmem:[%s303 + $0x38] sm:$0xf]
      %v312 = vld [vmem:[%s294 + $0x4] sm:$0x1]
      %v313 = vld [vmem:[%s294 + $0xc] sm:$0x1]
      %v314 = vld [vmem:[%s294 + $0x14] sm:$0x1]
      %v315 = vld [vmem:[%s294 + $0x1c] sm:$0x1]
      %v316 = vld [vmem:[%s294 + $0x24] sm:$0x1]
      %v317 = vld [vmem:[%s294 + $0x2c] sm:$0x1]
      %v318 = vld [vmem:[%s294 + $0x34] sm:$0x1]
      %v319 = vld [vmem:[%s294 + $0x3c] sm:$0x1]
      %v328 = vunpack.c.l.b16 %v252
      %v329 = vunpack.c.l.b16 %v253
      %v330 = vunpack.c.l.b16 %v254
      %v331 = vunpack.c.l.b16 %v255
      %v332 = vunpack.c.l.b16 %v256
      %v333 = vunpack.c.l.b16 %v257
      %v334 = vunpack.c.l.b16 %v258
      %v335 = vunpack.c.l.b16 %v259
      %v336 = vpack.c.b16 %v328, %v328
      %v337 = vpack.c.b16 %v329, %v329
      %v338 = vpack.c.b16 %v330, %v330
      %v339 = vpack.c.b16 %v331, %v331
      %v340 = vpack.c.b16 %v332, %v332
      %v341 = vpack.c.b16 %v333, %v333
      %v342 = vpack.c.b16 %v334, %v334
      %v343 = vpack.c.b16 %v335, %v335
      %344 = vrot.lane.b32.xlu0 %v336, 4
      %v345 = vpop.permute.xlu0 %344
      %346 = vrot.lane.b32.xlu0 %v337, 4
      %v347 = vpop.permute.xlu0 %346
      %348 = vrot.lane.b32.xlu0 %v338, 4
      %v349 = vpop.permute.xlu0 %348
      %350 = vrot.lane.b32.xlu0 %v339, 4
      %v351 = vpop.permute.xlu0 %350
      %352 = vrot.lane.b32.xlu0 %v340, 4
      %v353 = vpop.permute.xlu0 %352
      %354 = vrot.lane.b32.xlu0 %v341, 4
      %v355 = vpop.permute.xlu0 %354
      %356 = vrot.lane.b32.xlu0 %v342, 4
      %v357 = vpop.permute.xlu0 %356
      %358 = vrot.lane.b32.xlu0 %v343, 4
      %v359 = vpop.permute.xlu0 %358
      %v376 = vunpack.c.l.b16 %v243
      %v377 = vunpack.c.l.b16 %v260
      %v378 = vunpack.c.l.b16 %v244
      %v379 = vunpack.c.l.b16 %v261
      %v380 = vunpack.c.l.b16 %v245
      %v381 = vunpack.c.l.b16 %v262
      %v382 = vunpack.c.l.b16 %v246
      %v383 = vunpack.c.l.b16 %v263
      %v384 = vunpack.c.l.b16 %v247
      %v385 = vunpack.c.l.b16 %v264
      %v386 = vunpack.c.l.b16 %v248
      %v387 = vunpack.c.l.b16 %v265
      %v388 = vunpack.c.l.b16 %v249
      %v389 = vunpack.c.l.b16 %v266
      %v390 = vunpack.c.l.b16 %v250
      %v391 = vunpack.c.l.b16 %v267
      %v392 = vpack.c.b16 %v377, %v376
      %v393 = vpack.c.b16 %v379, %v378
      %v394 = vpack.c.b16 %v381, %v380
      %v395 = vpack.c.b16 %v383, %v382
      %v396 = vpack.c.b16 %v385, %v384
      %v397 = vpack.c.b16 %v387, %v386
      %v398 = vpack.c.b16 %v389, %v388
      %v399 = vpack.c.b16 %v391, %v390
      %v401 = vshrl.u32 %v392, 16
      %v403 = vshll.u32 %v392, 16
      %v405 = vrot.slane %v403, 1
      %v406 = vor.u32 %v401, %v405
      %v408 = vshrl.u32 %v393, 16
      %v410 = vshll.u32 %v393, 16
      %v412 = vrot.slane %v410, 1
      %v413 = vor.u32 %v408, %v412
      %v415 = vshrl.u32 %v394, 16
      %v417 = vshll.u32 %v394, 16
      %v419 = vrot.slane %v417, 1
      %v420 = vor.u32 %v415, %v419
      %v422 = vshrl.u32 %v395, 16
      %v424 = vshll.u32 %v395, 16
      %v426 = vrot.slane %v424, 1
      %v427 = vor.u32 %v422, %v426
      %v429 = vshrl.u32 %v396, 16
      %v431 = vshll.u32 %v396, 16
      %v433 = vrot.slane %v431, 1
      %v434 = vor.u32 %v429, %v433
      %v436 = vshrl.u32 %v397, 16
      %v438 = vshll.u32 %v397, 16
      %v440 = vrot.slane %v438, 1
      %v441 = vor.u32 %v436, %v440
      %v443 = vshrl.u32 %v398, 16
      %v445 = vshll.u32 %v398, 16
      %v447 = vrot.slane %v445, 1
      %v448 = vor.u32 %v443, %v447
      %v450 = vshrl.u32 %v399, 16
      %v452 = vshll.u32 %v399, 16
      %v454 = vrot.slane %v452, 1
      %v455 = vor.u32 %v450, %v454
      %456 = vrot.lane.b32.xlu0 %v406, 8
      %v457 = vpop.permute.xlu0 %456
      %458 = vrot.lane.b32.xlu0 %v413, 8
      %v459 = vpop.permute.xlu0 %458
      %460 = vrot.lane.b32.xlu0 %v420, 8
      %v461 = vpop.permute.xlu0 %460
      %462 = vrot.lane.b32.xlu0 %v427, 8
      %v463 = vpop.permute.xlu0 %462
      %464 = vrot.lane.b32.xlu0 %v434, 8
      %v465 = vpop.permute.xlu0 %464
      %466 = vrot.lane.b32.xlu0 %v441, 8
      %v467 = vpop.permute.xlu0 %466
      %468 = vrot.lane.b32.xlu0 %v448, 8
      %v469 = vpop.permute.xlu0 %468
      %470 = vrot.lane.b32.xlu0 %v455, 8
      %v471 = vpop.permute.xlu0 %470
      %v480 = vunpack.c.l.b16 %v269
      %v481 = vunpack.c.l.b16 %v270
      %v482 = vunpack.c.l.b16 %v271
      %v483 = vunpack.c.l.b16 %v272
      %v484 = vunpack.c.l.b16 %v273
      %v485 = vunpack.c.l.b16 %v274
      %v486 = vunpack.c.l.b16 %v275
      %v487 = vunpack.c.l.b16 %v276
      %v488 = vpack.c.b16 %v480, %v480
      %v489 = vpack.c.b16 %v481, %v481
      %v490 = vpack.c.b16 %v482, %v482
      %v491 = vpack.c.b16 %v483, %v483
      %v492 = vpack.c.b16 %v484, %v484
      %v493 = vpack.c.b16 %v485, %v485
      %v494 = vpack.c.b16 %v486, %v486
      %v495 = vpack.c.b16 %v487, %v487
      %496 = vrot.lane.b32.xlu0 %v488, 12
      %v497 = vpop.permute.xlu0 %496
      %498 = vrot.lane.b32.xlu0 %v489, 12
      %v499 = vpop.permute.xlu0 %498
      %500 = vrot.lane.b32.xlu0 %v490, 12
      %v501 = vpop.permute.xlu0 %500
      %502 = vrot.lane.b32.xlu0 %v491, 12
      %v503 = vpop.permute.xlu0 %502
      %504 = vrot.lane.b32.xlu0 %v492, 12
      %v505 = vpop.permute.xlu0 %504
      %506 = vrot.lane.b32.xlu0 %v493, 12
      %v507 = vpop.permute.xlu0 %506
      %508 = vrot.lane.b32.xlu0 %v494, 12
      %v509 = vpop.permute.xlu0 %508
      %510 = vrot.lane.b32.xlu0 %v495, 12
      %v511 = vpop.permute.xlu0 %510
      %v520 = vunpack.c.l.b16 %v278
      %v521 = vunpack.c.l.b16 %v279
      %v522 = vunpack.c.l.b16 %v280
      %v523 = vunpack.c.l.b16 %v281
      %v524 = vunpack.c.l.b16 %v282
      %v525 = vunpack.c.l.b16 %v283
      %v526 = vunpack.c.l.b16 %v284
      %v527 = vunpack.c.l.b16 %v285
      %v528 = vpack.c.b16 %v520, %v520
      %v529 = vpack.c.b16 %v521, %v521
      %v530 = vpack.c.b16 %v522, %v522
      %v531 = vpack.c.b16 %v523, %v523
      %v532 = vpack.c.b16 %v524, %v524
      %v533 = vpack.c.b16 %v525, %v525
      %v534 = vpack.c.b16 %v526, %v526
      %v535 = vpack.c.b16 %v527, %v527
      %536 = vrot.lane.b32.xlu0 %v528, 16
      %v537 = vpop.permute.xlu0 %536
      %538 = vrot.lane.b32.xlu0 %v529, 16
      %v539 = vpop.permute.xlu0 %538
      %540 = vrot.lane.b32.xlu0 %v530, 16
      %v541 = vpop.permute.xlu0 %540
      %542 = vrot.lane.b32.xlu0 %v531, 16
      %v543 = vpop.permute.xlu0 %542
      %544 = vrot.lane.b32.xlu0 %v532, 16
      %v545 = vpop.permute.xlu0 %544
      %546 = vrot.lane.b32.xlu0 %v533, 16
      %v547 = vpop.permute.xlu0 %546
      %548 = vrot.lane.b32.xlu0 %v534, 16
      %v549 = vpop.permute.xlu0 %548
      %550 = vrot.lane.b32.xlu0 %v535, 16
      %v551 = vpop.permute.xlu0 %550
      %v560 = vunpack.c.l.b16 %v286
      %v561 = vunpack.c.l.b16 %v287
      %v562 = vunpack.c.l.b16 %v288
      %v563 = vunpack.c.l.b16 %v289
      %v564 = vunpack.c.l.b16 %v290
      %v565 = vunpack.c.l.b16 %v291
      %v566 = vunpack.c.l.b16 %v292
      %v567 = vunpack.c.l.b16 %v293
      %v568 = vpack.c.b16 %v560, %v480
      %v569 = vpack.c.b16 %v561, %v481
      %v570 = vpack.c.b16 %v562, %v482
      %v571 = vpack.c.b16 %v563, %v483
      %v572 = vpack.c.b16 %v564, %v484
      %v573 = vpack.c.b16 %v565, %v485
      %v574 = vpack.c.b16 %v566, %v486
      %v575 = vpack.c.b16 %v567, %v487
      %v577 = vshrl.u32 %v568, 16
      %v579 = vshll.u32 %v568, 16
      %v581 = vrot.slane %v579, 1
      %v582 = vor.u32 %v577, %v581
      %v584 = vshrl.u32 %v569, 16
      %v586 = vshll.u32 %v569, 16
      %v588 = vrot.slane %v586, 1
      %v589 = vor.u32 %v584, %v588
      %v591 = vshrl.u32 %v570, 16
      %v593 = vshll.u32 %v570, 16
      %v595 = vrot.slane %v593, 1
      %v596 = vor.u32 %v591, %v595
      %v598 = vshrl.u32 %v571, 16
      %v600 = vshll.u32 %v571, 16
      %v602 = vrot.slane %v600, 1
      %v603 = vor.u32 %v598, %v602
      %v605 = vshrl.u32 %v572, 16
      %v607 = vshll.u32 %v572, 16
      %v609 = vrot.slane %v607, 1
      %v610 = vor.u32 %v605, %v609
      %v612 = vshrl.u32 %v573, 16
      %v614 = vshll.u32 %v573, 16
      %v616 = vrot.slane %v614, 1
      %v617 = vor.u32 %v612, %v616
      %v619 = vshrl.u32 %v574, 16
      %v621 = vshll.u32 %v574, 16
      %v623 = vrot.slane %v621, 1
      %v624 = vor.u32 %v619, %v623
      %v626 = vshrl.u32 %v575, 16
      %v628 = vshll.u32 %v575, 16
      %v630 = vrot.slane %v628, 1
      %v631 = vor.u32 %v626, %v630
      %632 = vrot.lane.b32.xlu0 %v582, 20
      %v633 = vpop.permute.xlu0 %632
      %634 = vrot.lane.b32.xlu0 %v589, 20
      %v635 = vpop.permute.xlu0 %634
      %636 = vrot.lane.b32.xlu0 %v596, 20
      %v637 = vpop.permute.xlu0 %636
      %638 = vrot.lane.b32.xlu0 %v603, 20
      %v639 = vpop.permute.xlu0 %638
      %640 = vrot.lane.b32.xlu0 %v610, 20
      %v641 = vpop.permute.xlu0 %640
      %642 = vrot.lane.b32.xlu0 %v617, 20
      %v643 = vpop.permute.xlu0 %642
      %644 = vrot.lane.b32.xlu0 %v624, 20
      %v645 = vpop.permute.xlu0 %644
      %646 = vrot.lane.b32.xlu0 %v631, 20
      %v647 = vpop.permute.xlu0 %646
      %v656 = vunpack.c.l.b16 %v295
      %v657 = vunpack.c.l.b16 %v296
      %v658 = vunpack.c.l.b16 %v297
      %v659 = vunpack.c.l.b16 %v298
      %v660 = vunpack.c.l.b16 %v299
      %v661 = vunpack.c.l.b16 %v300
      %v662 = vunpack.c.l.b16 %v301
      %v663 = vunpack.c.l.b16 %v302
      %v664 = vpack.c.b16 %v656, %v656
      %v665 = vpack.c.b16 %v657, %v657
      %v666 = vpack.c.b16 %v658, %v658
      %v667 = vpack.c.b16 %v659, %v659
      %v668 = vpack.c.b16 %v660, %v660
      %v669 = vpack.c.b16 %v661, %v661
      %v670 = vpack.c.b16 %v662, %v662
      %v671 = vpack.c.b16 %v663, %v663
      %672 = vrot.lane.b32.xlu0 %v664, 24
      %v673 = vpop.permute.xlu0 %672
      %674 = vrot.lane.b32.xlu0 %v665, 24
      %v675 = vpop.permute.xlu0 %674
      %676 = vrot.lane.b32.xlu0 %v666, 24
      %v677 = vpop.permute.xlu0 %676
      %678 = vrot.lane.b32.xlu0 %v667, 24
      %v679 = vpop.permute.xlu0 %678
      %680 = vrot.lane.b32.xlu0 %v668, 24
      %v681 = vpop.permute.xlu0 %680
      %682 = vrot.lane.b32.xlu0 %v669, 24
      %v683 = vpop.permute.xlu0 %682
      %684 = vrot.lane.b32.xlu0 %v670, 24
      %v685 = vpop.permute.xlu0 %684
      %686 = vrot.lane.b32.xlu0 %v671, 24
      %v687 = vpop.permute.xlu0 %686
      %v696 = vunpack.c.l.b16 %v304
      %v697 = vunpack.c.l.b16 %v305
      %v698 = vunpack.c.l.b16 %v306
      %v699 = vunpack.c.l.b16 %v307
      %v700 = vunpack.c.l.b16 %v308
      %v701 = vunpack.c.l.b16 %v309
      %v702 = vunpack.c.l.b16 %v310
      %v703 = vunpack.c.l.b16 %v311
      %v704 = vpack.c.b16 %v696, %v696
      %v705 = vpack.c.b16 %v697, %v697
      %v706 = vpack.c.b16 %v698, %v698
      %v707 = vpack.c.b16 %v699, %v699
      %v708 = vpack.c.b16 %v700, %v700
      %v709 = vpack.c.b16 %v701, %v701
      %v710 = vpack.c.b16 %v702, %v702
      %v711 = vpack.c.b16 %v703, %v703
      %712 = vrot.lane.b32.xlu0 %v704, 28
      %v713 = vpop.permute.xlu0 %712
      %714 = vrot.lane.b32.xlu0 %v705, 28
      %v715 = vpop.permute.xlu0 %714
      %716 = vrot.lane.b32.xlu0 %v706, 28
      %v717 = vpop.permute.xlu0 %716
      %718 = vrot.lane.b32.xlu0 %v707, 28
      %v719 = vpop.permute.xlu0 %718
      %720 = vrot.lane.b32.xlu0 %v708, 28
      %v721 = vpop.permute.xlu0 %720
      %722 = vrot.lane.b32.xlu0 %v709, 28
      %v723 = vpop.permute.xlu0 %722
      %724 = vrot.lane.b32.xlu0 %v710, 28
      %v725 = vpop.permute.xlu0 %724
      %726 = vrot.lane.b32.xlu0 %v711, 28
      %v727 = vpop.permute.xlu0 %726
      %v736 = vunpack.c.l.b16 %v312
      %v737 = vunpack.c.l.b16 %v313
      %v738 = vunpack.c.l.b16 %v314
      %v739 = vunpack.c.l.b16 %v315
      %v740 = vunpack.c.l.b16 %v316
      %v741 = vunpack.c.l.b16 %v317
      %v742 = vunpack.c.l.b16 %v318
      %v743 = vunpack.c.l.b16 %v319
      %v744 = vpack.c.b16 %v736, %v656
      %v745 = vpack.c.b16 %v737, %v657
      %v746 = vpack.c.b16 %v738, %v658
      %v747 = vpack.c.b16 %v739, %v659
      %v748 = vpack.c.b16 %v740, %v660
      %v749 = vpack.c.b16 %v741, %v661
      %v750 = vpack.c.b16 %v742, %v662
      %v751 = vpack.c.b16 %v743, %v663
      %v753 = vshrl.u32 %v744, 16
      %v755 = vshll.u32 %v744, 16
      %v757 = vrot.slane %v755, 1
      %v758 = vor.u32 %v753, %v757
      %v760 = vshrl.u32 %v745, 16
      %v762 = vshll.u32 %v745, 16
      %v764 = vrot.slane %v762, 1
      %v765 = vor.u32 %v760, %v764
      %v767 = vshrl.u32 %v746, 16
      %v769 = vshll.u32 %v746, 16
      %v771 = vrot.slane %v769, 1
      %v772 = vor.u32 %v767, %v771
      %v774 = vshrl.u32 %v747, 16
      %v776 = vshll.u32 %v747, 16
      %v778 = vrot.slane %v776, 1
      %v779 = vor.u32 %v774, %v778
      %v781 = vshrl.u32 %v748, 16
      %v783 = vshll.u32 %v748, 16
      %v785 = vrot.slane %v783, 1
      %v786 = vor.u32 %v781, %v785
      %v788 = vshrl.u32 %v749, 16
      %v790 = vshll.u32 %v749, 16
      %v792 = vrot.slane %v790, 1
      %v793 = vor.u32 %v788, %v792
      %v795 = vshrl.u32 %v750, 16
      %v797 = vshll.u32 %v750, 16
      %v799 = vrot.slane %v797, 1
      %v800 = vor.u32 %v795, %v799
      %v802 = vshrl.u32 %v751, 16
      %v804 = vshll.u32 %v751, 16
      %v806 = vrot.slane %v804, 1
      %v807 = vor.u32 %v802, %v806
      %808 = vrot.lane.b32.xlu0 %v758, 32
      %v809 = vpop.permute.xlu0 %808
      %810 = vrot.lane.b32.xlu0 %v765, 32
      %v811 = vpop.permute.xlu0 %810
      %812 = vrot.lane.b32.xlu0 %v772, 32
      %v813 = vpop.permute.xlu0 %812
      %814 = vrot.lane.b32.xlu0 %v779, 32
      %v815 = vpop.permute.xlu0 %814
      %816 = vrot.lane.b32.xlu0 %v786, 32
      %v817 = vpop.permute.xlu0 %816
      %818 = vrot.lane.b32.xlu0 %v793, 32
      %v819 = vpop.permute.xlu0 %818
      %820 = vrot.lane.b32.xlu0 %v800, 32
      %v821 = vpop.permute.xlu0 %820
      %822 = vrot.lane.b32.xlu0 %v807, 32
      %v823 = vpop.permute.xlu0 %822
      %vm824 = vcmask 31744
      %v827 = vsel %vm824, %v243, %v345
      %v830 = vsel %vm824, %v244, %v347
      %v833 = vsel %vm824, %v245, %v349
      %v836 = vsel %vm824, %v246, %v351
      %v839 = vsel %vm824, %v247, %v353
      %v842 = vsel %vm824, %v248, %v355
      %v845 = vsel %vm824, %v249, %v357
      %v848 = vsel %vm824, %v250, %v359
      %vm849 = vcmask 64512
      %v851 = vsel %vm849, %v827, %v457
      %v853 = vsel %vm849, %v830, %v459
      %v855 = vsel %vm849, %v833, %v461
      %v857 = vsel %vm849, %v836, %v463
      %v859 = vsel %vm849, %v839, %v465
      %v861 = vsel %vm849, %v842, %v467
      %v863 = vsel %vm849, %v845, %v469
      %v865 = vsel %vm849, %v848, %v471
      %vm866 = vcmask 97280
      %v868 = vsel %vm866, %v851, %v497
      %v870 = vsel %vm866, %v853, %v499
      %v872 = vsel %vm866, %v855, %v501
      %v874 = vsel %vm866, %v857, %v503
      %v876 = vsel %vm866, %v859, %v505
      %v878 = vsel %vm866, %v861, %v507
      %v880 = vsel %vm866, %v863, %v509
      %v882 = vsel %vm866, %v865, %v511
      %vm883 = vcmask 130048
      %v885 = vsel %vm883, %v868, %v537
      %v887 = vsel %vm883, %v870, %v539
      %v889 = vsel %vm883, %v872, %v541
      %v891 = vsel %vm883, %v874, %v543
      %v893 = vsel %vm883, %v876, %v545
      %v895 = vsel %vm883, %v878, %v547
      %v897 = vsel %vm883, %v880, %v549
      %v899 = vsel %vm883, %v882, %v551
      %vm900 = vcmask 162816
      %v902 = vsel %vm900, %v885, %v633
      %v904 = vsel %vm900, %v887, %v635
      %v906 = vsel %vm900, %v889, %v637
      %v908 = vsel %vm900, %v891, %v639
      %v910 = vsel %vm900, %v893, %v641
      %v912 = vsel %vm900, %v895, %v643
      %v914 = vsel %vm900, %v897, %v645
      %v916 = vsel %vm900, %v899, %v647
      %vm917 = vcmask 195584
      %v919 = vsel %vm917, %v902, %v673
      %v921 = vsel %vm917, %v904, %v675
      %v923 = vsel %vm917, %v906, %v677
      %v925 = vsel %vm917, %v908, %v679
      %v927 = vsel %vm917, %v910, %v681
      %v929 = vsel %vm917, %v912, %v683
      %v931 = vsel %vm917, %v914, %v685
      %v933 = vsel %vm917, %v916, %v687
      %vm934 = vcmask 228352
      %v936 = vsel %vm934, %v919, %v713
      %v938 = vsel %vm934, %v921, %v715
      %v940 = vsel %vm934, %v923, %v717
      %v942 = vsel %vm934, %v925, %v719
      %v944 = vsel %vm934, %v927, %v721
      %v946 = vsel %vm934, %v929, %v723
      %v948 = vsel %vm934, %v931, %v725
      %v950 = vsel %vm934, %v933, %v727
      %vm951 = vcmask 261120
      %v953 = vsel %vm951, %v936, %v809
      %v955 = vsel %vm951, %v938, %v811
      %v957 = vsel %vm951, %v940, %v813
      %v959 = vsel %vm951, %v942, %v815
      %v961 = vsel %vm951, %v944, %v817
      %v963 = vsel %vm951, %v946, %v819
      %v965 = vsel %vm951, %v948, %v821
      %v967 = vsel %vm951, %v950, %v823
      %v968 = vld [vmem:[%s1] sm:$0xf]
      %v969 = vld [vmem:[%s1 + $0x4] sm:$0xf]
      %v970 = vld [vmem:[%s1 + $0x8] sm:$0xf]
      %v971 = vld [vmem:[%s1 + $0xc] sm:$0xf]
      %v972 = vld [vmem:[%s1 + $0x10] sm:$0x3]
      %v973 = vld [vmem:[%s2] sm:$0x1]
      %v975 = vlaneseq
      %v976 = vshrl.u32 %v975, 7
      %v977 = vsub.s32 0, %v976
      %v978 = vrot.slane %v973, %v977
      %v988 = vunpack.c.l.b16 %v953
      %v989 = vunpack.c.l.b16 %v955
      %v990 = vunpack.c.l.b16 %v957
      %v991 = vunpack.c.l.b16 %v959
      %v992 = vunpack.c.l.b16 %v961
      %v993 = vunpack.c.l.b16 %v963
      %v994 = vunpack.c.l.b16 %v965
      %v995 = vunpack.c.l.b16 %v967
      %v996 = vpack.c.b16 %v989, %v988
      %v997 = vpack.c.b16 %v991, %v990
      %v998 = vpack.c.b16 %v993, %v992
      %v999 = vpack.c.b16 %v995, %v994
      %v1005 = vunpack.c.l.b16 %v968
      %v1006 = vunpack.c.l.b16 %v969
      %v1007 = vunpack.c.l.b16 %v970
      %v1008 = vunpack.c.l.b16 %v971
      %v1009 = vunpack.c.l.b16 %v972
      %v1010 = vpack.c.b16 %v1006, %v1005
      %v1011 = vpack.c.b16 %v1008, %v1007
      %v1012 = vpack.c.b16 %v1009, %v1009
      %vm1015 = vcmask 293888
      %v1017 = vsel %vm1015, %v996, 0
      %v1020 = vsel %vm1015, %v997, 0
      %v1023 = vsel %vm1015, %v998, 0
      %v1026 = vsel %vm1015, %v999, 0
      %vm1028 = vcmask 1041408
      %v1030 = vsel %vm1028, %v1012, 0
      %1032 = vmatprep.subr.bf16.mxu0 0
      %1033 = vmatpush1.bf16.msra.mxu0 0
      %1034 = vmatprep.subr.bf16.mxu0 0
      %1035 = vmatpush1.bf16.msra.mxu0 0
      %1036 = vmatprep.subr.bf16.mxu0 0
      %1037 = vmatpush1.bf16.msra.mxu0 0
      %1038 = vmatprep.subr.bf16.mxu0 0
      %1039 = vmatpush1.bf16.msra.mxu0 0
      %1040 = vmatprep.subr.bf16.mxu0 0
      %1041 = vmatpush1.bf16.msra.mxu0 0
      %1042 = vmatprep.subr.bf16.mxu0 0
      %1043 = vmatpush1.bf16.msra.mxu0 %v1030
      %1044 = vmatprep.subr.bf16.mxu0 0
      %1045 = vmatpush1.bf16.msra.mxu0 %v1011
      %1046 = vmatprep.subr.bf16.mxu0 0
      %1047 = vmatpush1.bf16.msra.mxu0 %v1010
      %1048 = vmatprep.subr.bf16.mxu0 0
      %1049 = vmatpush2.bf16.msra.mxu0 0
      %1050 = vmatprep.subr.bf16.mxu0 0
      %1051 = vmatpush2.bf16.msra.mxu0 0
      %1052 = vmatprep.subr.bf16.mxu0 0
      %1053 = vmatpush2.bf16.msra.mxu0 0
      %1054 = vmatprep.subr.bf16.mxu0 0
      %1055 = vmatpush2.bf16.msra.mxu0 0
      %1056 = vmatprep.subr.bf16.mxu0 0
      %1057 = vmatpush2.bf16.msra.mxu0 0
      %1058 = vmatprep.subr.bf16.mxu0 0
      %1059 = vmatpush2.bf16.msra.mxu0 0
      %1060 = vmatprep.subr.bf16.mxu0 0
      %1061 = vmatpush2.bf16.msra.mxu0 0
      %1062 = vmatprep.subr.bf16.mxu0 0
      %1063 = vmatpush2.bf16.msra.mxu0 0
      %1064 = vmatprep.mubr.bf16.mxu0 0
      %1065 = vmatmul.mubr.bf16.gmra.mxu0 %v1017
      %v1066 = vpop.f32.mrf.mxu0
      %v1067 = vadd.f32 %v978, %v1066
      %v1068 = vpop.f32.mrf.mxu0
      %v1069 = vpop.f32.mrf.mxu0
      %v1070 = vadd.f32 %v978, %v1069
      %v1071 = vpop.f32.mrf.mxu0
      %1072 = vmatprep.mubr.bf16.mxu0 0
      %1073 = vmatmul.mubr.bf16.gmra.mxu0 %v1020
      %v1074 = vpop.f32.mrf.mxu0
      %v1075 = vadd.f32 %v978, %v1074
      %v1076 = vpop.f32.mrf.mxu0
      %v1077 = vpop.f32.mrf.mxu0
      %v1078 = vadd.f32 %v978, %v1077
      %v1079 = vpop.f32.mrf.mxu0
      %1080 = vmatprep.mubr.bf16.mxu0 0
      %1081 = vmatmul.mubr.bf16.gmra.mxu0 %v1023
      %v1082 = vpop.f32.mrf.mxu0
      %v1083 = vadd.f32 %v978, %v1082
      %v1084 = vpop.f32.mrf.mxu0
      %v1085 = vpop.f32.mrf.mxu0
      %v1086 = vadd.f32 %v978, %v1085
      %v1087 = vpop.f32.mrf.mxu0
      %1088 = vmatprep.mubr.bf16.mxu0 0
      %1089 = vmatmul.mubr.bf16.gmra.mxu0 %v1026
      %v1090 = vpop.f32.mrf.mxu0
      %v1091 = vadd.f32 %v978, %v1090
      %v1092 = vpop.f32.mrf.mxu0
      %v1093 = vpop.f32.mrf.mxu0
      %v1094 = vadd.f32 %v978, %v1093
      %v1095 = vpop.f32.mrf.mxu0
      %1096 = vdwg.mxu0
      %vm1097 = vcmp.ge.f32.partialorder %v1067, 0.0
      %vm1098 = vcmp.ge.f32.partialorder %v1070, 0.0
      %vm1099 = vcmp.ge.f32.partialorder %v1075, 0.0
      %vm1100 = vcmp.ge.f32.partialorder %v1078, 0.0
      %vm1101 = vcmp.ge.f32.partialorder %v1083, 0.0
      %vm1102 = vcmp.ge.f32.partialorder %v1086, 0.0
      %vm1103 = vcmp.ge.f32.partialorder %v1091, 0.0
      %vm1104 = vcmp.ge.f32.partialorder %v1094, 0.0
      %v1105 = vmul.f32 %v1067, 0.1
      %v1106 = vmul.f32 %v1070, 0.1
      %v1107 = vmul.f32 %v1075, 0.1
      %v1108 = vmul.f32 %v1078, 0.1
      %v1109 = vmul.f32 %v1083, 0.1
      %v1110 = vmul.f32 %v1086, 0.1
      %v1111 = vmul.f32 %v1091, 0.1
      %v1112 = vmul.f32 %v1094, 0.1
      %v1113 = vsel %vm1097, %v1067, %v1105
      %v1114 = vsel %vm1098, %v1070, %v1106
      %v1115 = vsel %vm1099, %v1075, %v1107
      %v1116 = vsel %vm1100, %v1078, %v1108
      %v1117 = vsel %vm1101, %v1083, %v1109
      %v1118 = vsel %vm1102, %v1086, %v1110
      %v1119 = vsel %vm1103, %v1091, %v1111
      %v1120 = vsel %vm1104, %v1094, %v1112
      %v1121 = vpack.c.bf16 %v1114, %v1113
      %v1122 = vpack.c.bf16 %v1116, %v1115
      %v1123 = vpack.c.bf16 %v1118, %v1117
      %v1124 = vpack.c.bf16 %v1120, %v1119
      %v1129 = vunpack.c.l.b16 %v1121
      %v1130 = vunpack.c.h.b16 %v1121
      %v1131 = vunpack.c.l.b16 %v1122
      %v1132 = vunpack.c.h.b16 %v1122
      %v1133 = vunpack.c.l.b16 %v1123
      %v1134 = vunpack.c.h.b16 %v1123
      %v1135 = vunpack.c.l.b16 %v1124
      %v1136 = vunpack.c.h.b16 %v1124
      %v1137 = vpack.c.b16 %v1129, %v1129
      %v1138 = vpack.c.b16 %v1130, %v1130
      %v1139 = vpack.c.b16 %v1131, %v1131
      %v1140 = vpack.c.b16 %v1132, %v1132
      %v1141 = vpack.c.b16 %v1133, %v1133
      %v1142 = vpack.c.b16 %v1134, %v1134
      %v1143 = vpack.c.b16 %v1135, %v1135
      %v1144 = vpack.c.b16 %v1136, %v1136
      %vm1153 = vcmask 60416
      %1154 = vst.msk [vmem:[%s235] sm:$0xf] %vm1153, %v1137
      %1155 = vst.msk [vmem:[%s235 + $0x4] sm:$0xf] %vm1153, %v1138
      %1156 = vst.msk [vmem:[%s235 + $0x8] sm:$0xf] %vm1153, %v1139
      %1157 = vst.msk [vmem:[%s235 + $0xc] sm:$0xf] %vm1153, %v1140
      %1158 = vst.msk [vmem:[%s235 + $0x10] sm:$0xf] %vm1153, %v1141
      %1159 = vst.msk [vmem:[%s235 + $0x14] sm:$0xf] %vm1153, %v1142
      %1160 = vst.msk [vmem:[%s235 + $0x18] sm:$0xf] %vm1153, %v1143
      %1161 = vst.msk [vmem:[%s235 + $0x1c] sm:$0xf] %vm1153, %v1144
      %v1162 = vsel %vm849, %v1113, 0.0
      %v1163 = vsel %vm849, %v1114, 0.0
      %v1164 = vadd.f32 %v1162, %v1163
      %v1165 = vsel %vm849, %v1115, 0.0
      %v1166 = vadd.f32 %v1164, %v1165
      %v1167 = vsel %vm849, %v1116, 0.0
      %v1168 = vadd.f32 %v1166, %v1167
      %v1169 = vsel %vm849, %v1117, 0.0
      %v1170 = vadd.f32 %v1168, %v1169
      %v1171 = vsel %vm849, %v1118, 0.0
      %v1172 = vadd.f32 %v1170, %v1171
      %v1173 = vsel %vm849, %v1119, 0.0
      %v1174 = vadd.f32 %v1172, %v1173
      %v1175 = vsel %vm849, %v1120, 0.0
      %v1176 = vadd.f32 %v1174, %v1175
      %v1177 = vrot.slane %v1176, 4
      %v1178 = vadd.f32 %v1176, %v1177
      %v1179 = vrot.slane %v1178, 2
      %v1180 = vadd.f32 %v1178, %v1179
      %v1181 = vrot.slane %v1180, 1
      %v1182 = vadd.f32 %v1180, %v1181
      %vm1183 = vcmask 57344
      %1184 = vst.msk [vmem:[%s238] sm:$0x1] %vm1183, %v1182
      %v1185 = vmul.f32 %v1113, %v1113
      %v1186 = vmul.f32 %v1114, %v1114
      %v1187 = vmul.f32 %v1115, %v1115
      %v1188 = vmul.f32 %v1116, %v1116
      %v1189 = vmul.f32 %v1117, %v1117
      %v1190 = vmul.f32 %v1118, %v1118
      %v1191 = vmul.f32 %v1119, %v1119
      %v1192 = vmul.f32 %v1120, %v1120
      %v1193 = vsel %vm849, %v1185, 0.0
      %v1194 = vsel %vm849, %v1186, 0.0
      %v1195 = vadd.f32 %v1193, %v1194
      %v1196 = vsel %vm849, %v1187, 0.0
      %v1197 = vadd.f32 %v1195, %v1196
      %v1198 = vsel %vm849, %v1188, 0.0
      %v1199 = vadd.f32 %v1197, %v1198
      %v1200 = vsel %vm849, %v1189, 0.0
      %v1201 = vadd.f32 %v1199, %v1200
      %v1202 = vsel %vm849, %v1190, 0.0
      %v1203 = vadd.f32 %v1201, %v1202
      %v1204 = vsel %vm849, %v1191, 0.0
      %v1205 = vadd.f32 %v1203, %v1204
      %v1206 = vsel %vm849, %v1192, 0.0
      %v1207 = vadd.f32 %v1205, %v1206
      %v1208 = vrot.slane %v1207, 4
      %v1209 = vadd.f32 %v1207, %v1208
      %v1210 = vrot.slane %v1209, 2
      %v1211 = vadd.f32 %v1209, %v1210
      %v1212 = vrot.slane %v1211, 1
      %v1213 = vadd.f32 %v1211, %v1212
      %1214 = vst.msk [vmem:[%s241] sm:$0x1] %vm1183, %v1213
      %p1215 = scmp.lt.s32.totalorder %s17, 1
      %s1216 = scalar_select %p1215, %s17, 1
      %s1217 = smul.addr %s1216, 8
      %s1218 = smul.addr %s1217, 4
      %s1219 = scalar_lea.vmem %s3, %s1218
      %p1220 = scmp.lt.s32.totalorder %s17, 1
      %s1221 = scalar_select %p1220, %s17, 1
      %s1222 = scalar_lea.vmem %s4, %s1221
      %p1223 = scmp.lt.s32.totalorder %s17, 1
      %s1224 = scalar_select %p1223, %s17, 1
      %s1225 = scalar_lea.vmem %s5, %s1224
      // Predicated region
      $region33: #{pyramid_block.6} parent=31 // pred_check
        %p1226 = pneg %p103
      $region34: #{pyramid_block.6} parent=31 // pred_check_branch
        %1228 = sbr.rel (%p1226) target = $region36
      $region35: #{pyramid_block.6} parent=31 // pred_region
        _
      $region36: #{pyramid_block.6} parent=31 // pred_fallthru
        _
      // Predicated region
      $region37: #{pyramid_block.6} parent=31 // pred_check
        %p1229 = pneg %p129
      $region38: #{pyramid_block.6} parent=31 // pred_check_branch
        %1231 = sbr.rel (%p1229) target = $region40
      $region39: #{pyramid_block.6} parent=31 // pred_region
        _
      $region40: #{pyramid_block.6} parent=31 // pred_fallthru
        _
      // Predicated region
      $region41: #{pyramid_block.6} parent=31 // pred_check
        %p1232 = pneg %p155
      $region42: #{pyramid_block.6} parent=31 // pred_check_branch
        %1234 = sbr.rel (%p1232) target = $region44
      $region43: #{pyramid_block.6} parent=31 // pred_region
        _
      $region44: #{pyramid_block.6} parent=31 // pred_fallthru
        _
    $region32: #{pyramid_block.6} parent=5 // pred_fallthru
      _
    %p1235 = scmp.le.s32.totalorder 2, %s12
    // Predicated region
    $region45: #{pyramid_block.6} parent=5 // pred_check
      %p1236 = pneg %p1235
    $region46: #{pyramid_block.6} parent=5 // pred_check_branch
      %1238 = sbr.rel (%p1236) target = $region48
    $region47: #{pyramid_block.6} parent=5 // pred_region
      %s1239 = ssub.s32 %s12, 2
      // Predicated region
      $region49: #{pyramid_block.6} parent=47 // pred_check
        %p1240 = pneg %p109
      $region50: #{pyramid_block.6} parent=47 // pred_check_branch
        %1242 = sbr.rel (%p1240) target = $region52
      $region51: #{pyramid_block.6} parent=47 // pred_region
        %p1243 = scmp.lt.s32.totalorder %s18, 1
        %s1244 = scalar_select %p1243, %s18, 1
        %s1245 = smul.addr %s1244, 8
        %s1246 = smul.addr %s1245, 4
        %s1247 = scalar_lea.vmem %s3, %s1246
      $region52: #{pyramid_block.6} parent=47 // pred_fallthru
        _
      // Predicated region
      $region53: #{pyramid_block.6} parent=47 // pred_check
        %p1248 = pneg %p135
      $region54: #{pyramid_block.6} parent=47 // pred_check_branch
        %1250 = sbr.rel (%p1248) target = $region56
      $region55: #{pyramid_block.6} parent=47 // pred_region
        %p1251 = scmp.lt.s32.totalorder %s18, 1
        %s1252 = scalar_select %p1251, %s18, 1
        %s1253 = scalar_lea.vmem %s4, %s1252
      $region56: #{pyramid_block.6} parent=47 // pred_fallthru
        _
      // Predicated region
      $region57: #{pyramid_block.6} parent=47 // pred_check
        %p1254 = pneg %p161
      $region58: #{pyramid_block.6} parent=47 // pred_check_branch
        %1256 = sbr.rel (%p1254) target = $region60
      $region59: #{pyramid_block.6} parent=47 // pred_region
        %p1257 = scmp.lt.s32.totalorder %s18, 1
        %s1258 = scalar_select %p1257, %s18, 1
        %s1259 = scalar_lea.vmem %s5, %s1258
      $region60: #{pyramid_block.6} parent=47 // pred_fallthru
        _
    $region48: #{pyramid_block.6} parent=5 // pred_fallthru
      _
  $region6: #{pyramid_block.6} parent=0 // loop_footer
    %s16 = sadd.s32 1, %s12
  $region7: #{pyramid_block.6} parent=0 // loop_footer_branch
    %11 = sbr.rel target = $region3
  $region8: #{pyramid_block.6} parent=0 // loop_exit
    _

// kernel: pyramid_block.8
$region0: #{pyramid_block.8}
  #allocation0 [shape = 'u32[]', space=smem, size = 0x4, offset = 0x4, fixed_abs, tag = 'smem constant byte address 0x4 - core index']
  #allocation1 [shape = 'u32[144,128]{1,0:T(1,128)}', space=vmem, size = 0x12000, scoped, tag = 'internal scratch']
  %s0 = inlined_call_operand.vmem [shape: bf16[2,10,10,8], index: 0, kind: input, shape index: {}]
  %s1 = inlined_call_operand.vmem [shape: bf16[72,8], index: 1, kind: input, shape index: {}]
  %s2 = inlined_call_operand.vmem [shape: f32[1,8], index: 2, kind: input, shape index: {}]
  %s3 = inlined_call_operand.vmem [shape: bf16[2,64,8], index: 3, kind: output, shape index: {0}]
  %s4 = inlined_call_operand.vmem [shape: f32[2,1,8], index: 4, kind: output, shape index: {1}]
  %s5 = inlined_call_operand.vmem [shape: f32[2,1,8], index: 5, kind: output, shape index: {2}]
  %6 = xla_tuple %s3, %s4, %s5
  %s7 = sld [smem:[#allocation0]]
  $region61: #{pyramid_block.8} parent=0
    _
  %s9 = ssub.s32 1, %s7
  %s10 = scalar_select 0, %s9, %s7
  loop: start=0, step=1, limit=4
  $region2: #{pyramid_block.8} parent=0 // loop_pre_header
    _
  $region3: #{pyramid_block.8} parent=0 // loop_header
    %s12 = sphi 0, %s16
    %p13 = scmp.ge.s32.totalorder %s12, 4
    %s22 = sphi 0, %s24
    %s25 = sphi 0, %s22
    %s26 = sphi 0, %s25
    %s42 = sphi 0, %s26
    %s46 = sphi 0, %s46
    %s48 = sphi 0, %s46
    %s49 = sphi 0, %s48
    %s63 = sphi 0, %s49
    %s67 = sphi 0, %s67
    %s69 = sphi 0, %s67
    %s70 = sphi 0, %s69
    %s84 = sphi 0, %s70
    %s90 = sphi 0, %s92
    %s93 = sphi 0, %s90
    %s94 = sphi 0, %s93
    %s110 = sphi 0, %s94
    %s116 = sphi 0, %s118
    %s119 = sphi 0, %s116
    %s120 = sphi 0, %s119
    %s136 = sphi 0, %s120
    %s142 = sphi 0, %s144
    %s145 = sphi 0, %s142
    %s146 = sphi 0, %s145
    %s162 = sphi 0, %s146
  $region4: #{pyramid_block.8} parent=0 // loop_header_branch
    %15 = sbr.rel (%p13) target = $region8
  $region5: #{pyramid_block.8} parent=0 // loop_body
    %s17 = ssub.s32 %s12, 1
    %s18 = ssub.s32 %s12, 2
    %s19 = sadd.s32 %s12, 1
    %s20 = ssub.s32 %s12, %s19
    %p21 = scmp.eq.s32.totalorder %s20, 0
    %s23 = sadd.s32 %s22, 1
    %s24 = scalar_select %p21, %s22, %s23
    %p27 = pneg %p21
    %p28 = scmp.eq.s32.totalorder %s12, 1
    %p29 = por %p27, %p28
    %p30 = scmp.ne.s32.totalorder %s22, %s25
    %p31 = scmp.eq.s32.totalorder %s12, 0
    %p32 = por %p30, %p31
    %p33 = scmp.ne.s32.totalorder %s22, %s25
    %p34 = scmp.eq.s32.totalorder %s17, 1
    %p35 = por %p33, %p34
    %p36 = scmp.ne.s32.totalorder %s25, %s26
    %p37 = scmp.eq.s32.totalorder %s17, 0
    %p38 = por %p36, %p37
    %p39 = scmp.ne.s32.totalorder %s25, %s26
    %p40 = scmp.eq.s32.totalorder %s18, 1
    %p41 = por %p39, %p40
    %p43 = scmp.ne.s32.totalorder %s26, %s42
    %p44 = scmp.eq.s32.totalorder %s18, 0
    %p45 = por %p43, %p44
    %s47 = sadd.s32 %s46, 1
    %p50 = scmp.eq.s32.totalorder %s12, 1
    %p51 = scmp.ne.s32.totalorder %s46, %s48
    %p52 = scmp.eq.s32.totalorder %s12, 0
    %p53 = por %p51, %p52
    %p54 = scmp.ne.s32.totalorder %s46, %s48
    %p55 = scmp.eq.s32.totalorder %s17, 1
    %p56 = por %p54, %p55
    %p57 = scmp.ne.s32.totalorder %s48, %s49
    %p58 = scmp.eq.s32.totalorder %s17, 0
    %p59 = por %p57, %p58
    %p60 = scmp.ne.s32.totalorder %s48, %s49
    %p61 = scmp.eq.s32.totalorder %s18, 1
    %p62 = por %p60, %p61
    %p64 = scmp.ne.s32.totalorder %s49, %s63
    %p65 = scmp.eq.s32.totalorder %s18, 0
    %p66 = por %p64, %p65
    %s68 = sadd.s32 %s67, 1
    %p71 = scmp.eq.s32.totalorder %s12, 1
    %p72 = scmp.ne.s32.totalorder %s67, %s69
    %p73 = scmp.eq.s32.totalorder %s12, 0
    %p74 = por %p72, %p73
    %p75 = scmp.ne.s32.totalorder %s67, %s69
    %p76 = scmp.eq.s32.totalorder %s17, 1
    %p77 = por %p75, %p76
    %p78 = scmp.ne.s32.totalorder %s69, %s70
    %p79 = scmp.eq.s32.totalorder %s17, 0
    %p80 = por %p78, %p79
    %p81 = scmp.ne.s32.totalorder %s69, %s70
    %p82 = scmp.eq.s32.totalorder %s18, 1
    %p83 = por %p81, %p82
    %p85 = scmp.ne.s32.totalorder %s70, %s84
    %p86 = scmp.eq.s32.totalorder %s18, 0
    %p87 = por %p85, %p86
    %s88 = ssub.s32 %s12, %s19
    %p89 = scmp.eq.s32.totalorder %s88, 0
    %s91 = sadd.s32 %s90, 1
    %s92 = scalar_select %p89, %s90, %s91
    %p95 = pneg %p89
    %p96 = scmp.eq.s32.totalorder %s12, 1
    %p97 = por %p95, %p96
    %p98 = scmp.ne.s32.totalorder %s90, %s93
    %p99 = scmp.eq.s32.totalorder %s12, 0
    %p100 = por %p98, %p99
    %p101 = scmp.ne.s32.totalorder %s90, %s93
    %p102 = scmp.eq.s32.totalorder %s17, 1
    %p103 = por %p101, %p102
    %p104 = scmp.ne.s32.totalorder %s93, %s94
    %p105 = scmp.eq.s32.totalorder %s17, 0
    %p106 = por %p104, %p105
    %p107 = scmp.ne.s32.totalorder %s93, %s94
    %p108 = scmp.eq.s32.totalorder %s18, 1
    %p109 = por %p107, %p108
    %p111 = scmp.ne.s32.totalorder %s94, %s110
    %p112 = scmp.eq.s32.totalorder %s18, 0
    %p113 = por %p111, %p112
    %s114 = ssub.s32 %s12, %s19
    %p115 = scmp.eq.s32.totalorder %s114, 0
    %s117 = sadd.s32 %s116, 1
    %s118 = scalar_select %p115, %s116, %s117
    %p121 = pneg %p115
    %p122 = scmp.eq.s32.totalorder %s12, 1
    %p123 = por %p121, %p122
    %p124 = scmp.ne.s32.totalorder %s116, %s119
    %p125 = scmp.eq.s32.totalorder %s12, 0
    %p126 = por %p124, %p125
    %p127 = scmp.ne.s32.totalorder %s116, %s119
    %p128 = scmp.eq.s32.totalorder %s17, 1
    %p129 = por %p127, %p128
    %p130 = scmp.ne.s32.totalorder %s119, %s120
    %p131 = scmp.eq.s32.totalorder %s17, 0
    %p132 = por %p130, %p131
    %p133 = scmp.ne.s32.totalorder %s119, %s120
    %p134 = scmp.eq.s32.totalorder %s18, 1
    %p135 = por %p133, %p134
    %p137 = scmp.ne.s32.totalorder %s120, %s136
    %p138 = scmp.eq.s32.totalorder %s18, 0
    %p139 = por %p137, %p138
    %s140 = ssub.s32 %s12, %s19
    %p141 = scmp.eq.s32.totalorder %s140, 0
    %s143 = sadd.s32 %s142, 1
    %s144 = scalar_select %p141, %s142, %s143
    %p147 = pneg %p141
    %p148 = scmp.eq.s32.totalorder %s12, 1
    %p149 = por %p147, %p148
    %p150 = scmp.ne.s32.totalorder %s142, %s145
    %p151 = scmp.eq.s32.totalorder %s12, 0
    %p152 = por %p150, %p151
    %p153 = scmp.ne.s32.totalorder %s142, %s145
    %p154 = scmp.eq.s32.totalorder %s17, 1
    %p155 = por %p153, %p154
    %p156 = scmp.ne.s32.totalorder %s145, %s146
    %p157 = scmp.eq.s32.totalorder %s17, 0
    %p158 = por %p156, %p157
    %p159 = scmp.ne.s32.totalorder %s145, %s146
    %p160 = scmp.eq.s32.totalorder %s18, 1
    %p161 = por %p159, %p160
    %p163 = scmp.ne.s32.totalorder %s146, %s162
    %p164 = scmp.eq.s32.totalorder %s18, 0
    %p165 = por %p163, %p164
    %p166 = scmp.le.s32.totalorder 1, %s12
    %p167 = scmp.lt.s32.totalorder %s12, 3
    %p168 = pnand %p166, %p167
    %p169 = pneg %p168
    // Predicated region
    $region9: #{pyramid_block.8} parent=5 // pred_check
      _
    $region10: #{pyramid_block.8} parent=5 // pred_check_branch
      %171 = sbr.rel (%p168) target = $region12
    $region11: #{pyramid_block.8} parent=5 // pred_region
      %s172 = ssub.s32 %s12, 1
      // Predicated region
      $region13: #{pyramid_block.8} parent=11 // pred_check
        %p173 = pneg %p59
      $region14: #{pyramid_block.8} parent=11 // pred_check_branch
        %175 = sbr.rel (%p173) target = $region16
      $region15: #{pyramid_block.8} parent=11 // pred_region
        _
      $region16: #{pyramid_block.8} parent=11 // pred_fallthru
        _
      // Predicated region
      $region17: #{pyramid_block.8} parent=11 // pred_check
        %p176 = pneg %p80
      $region18: #{pyramid_block.8} parent=11 // pred_check_branch
        %178 = sbr.rel (%p176) target = $region20
      $region19: #{pyramid_block.8} parent=11 // pred_region
        _
      $region20: #{pyramid_block.8} parent=11 // pred_fallthru
        _
    $region12: #{pyramid_block.8} parent=5 // pred_fallthru
      _
    %p179 = scmp.lt.s32.totalorder %s12, 2
    // Predicated region
    $region21: #{pyramid_block.8} parent=5 // pred_check
      %p180 = pneg %p179
    $region22: #{pyramid_block.8} parent=5 // pred_check_branch
      %182 = sbr.rel (%p180) target = $region24
    $region23: #{pyramid_block.8} parent=5 // pred_region
      // Predicated region
      $region25: #{pyramid_block.8} parent=23 // pred_check
        %p183 = pneg %p32
      $region26: #{pyramid_block.8} parent=23 // pred_check_branch
        %185 = sbr.rel (%p183) target = $region28
      $region27: #{pyramid_block.8} parent=23 // pred_region
        %p186 = scmp.lt.s32.totalorder %s12, 1
        %s187 = scalar_select %p186, %s12, 1
        %s188 = smul.addr %s187, 20
        %s189 = smul.addr %s188, 4
        %s190 = scalar_lea.vmem %s0, %s189
      $region28: #{pyramid_block.8} parent=23 // pred_fallthru
        _
    $region24: #{pyramid_block.8} parent=5 // pred_fallthru
      _
    %p191 = scmp.le.s32.totalorder 1, %s12
    %p192 = scmp.lt.s32.totalorder %s12, 3
    %p193 = pnand %p191, %p192
    %p194 = pneg %p193
    // Predicated region
    $region29: #{pyramid_block.8} parent=5 // pred_check
      _
    $region30: #{pyramid_block.8} parent=5 // pred_check_branch
      %196 = sbr.rel (%p193) target = $region32
    $region31: #{pyramid_block.8} parent=5 // pred_region
      %s197 = ssub.s32 %s12, 1
      %p198 = scmp.lt.s32.totalorder %s17, 1
      %s199 = scalar_select %p198, %s17, 1
      %s200 = smul.addr %s199, 20
      %s201 = smul.addr %s200, 4
      %s202 = scalar_lea.vmem %s0, %s201
      %p203 = pneg %p38
      %p204 = pneg %p35
      %p205 = pneg %p59
      %p206 = pneg %p56
      %p207 = pneg %p80
      %p208 = pneg %p77
      %p209 = pneg %p106
      %p210 = pneg %p103
      %p211 = scmp.lt.s32.totalorder %s17, 1
      %s212 = scalar_select %p211, %s17, 1
      %s213 = smul.addr %s212, 8
      %s214 = smul.addr %s213, 4
      %s215 = scalar_lea.vmem %s3, %s214
      %p216 = pneg %p132
      %p217 = pneg %p129
      %p218 = scmp.lt.s32.totalorder %s17, 1
      %s219 = scalar_select %p218, %s17, 1
      %s220 = scalar_lea.vmem %s4, %s219
      %p221 = pneg %p158
      %p222 = pneg %p155
      %p223 = scmp.lt.s32.totalorder %s17, 1
      %s224 = scalar_select %p223, %s17, 1
      %s225 = scalar_lea.vmem %s5, %s224
      %p226 = scmp.lt.s32.totalorder %s17, 1
      %s227 = scalar_select %p226, %s17, 1
      %s228 = smul.addr %s227, 20
      %s229 = smul.addr %s228, 4
      %s230 = scalar_lea.vmem %s0, %s229
      %p231 = scmp.lt.s32.totalorder %s17, 1
      %s232 = scalar_select %p231, %s17, 1
      %s233 = smul.addr %s232, 8
      %s234 = smul.addr %s233, 4
      %s235 = scalar_lea.vmem %s3, %s234
      %p236 = scmp.lt.s32.totalorder %s17, 1
      %s237 = scalar_select %p236, %s17, 1
      %s238 = scalar_lea.vmem %s4, %s237
      %p239 = scmp.lt.s32.totalorder %s17, 1
      %s240 = scalar_select %p239, %s17, 1
      %s241 = scalar_lea.vmem %s5, %s240
      %v243 = vld [vmem:[%s230] sm:$0xf]
      %v244 = vld [vmem:[%s230 + $0x8] sm:$0xf]
      %v245 = vld [vmem:[%s230 + $0x10] sm:$0xf]
      %v246 = vld [vmem:[%s230 + $0x18] sm:$0xf]
      %v247 = vld [vmem:[%s230 + $0x20] sm:$0xf]
      %v248 = vld [vmem:[%s230 + $0x28] sm:$0xf]
      %v249 = vld [vmem:[%s230 + $0x30] sm:$0xf]
      %v250 = vld [vmem:[%s230 + $0x38] sm:$0xf]
      %v251 = vld [vmem:[%s230 + $0x4] sm:$0x1]
      %v252 = vld [vmem:[%s230 + $0xc] sm:$0x1]
      %v253 = vld [vmem:[%s230 + $0x14] sm:$0x1]
      %v254 = vld [vmem:[%s230 + $0x1c] sm:$0x1]
      %v255 = vld [vmem:[%s230 + $0x24] sm:$0x1]
      %v256 = vld [vmem:[%s230 + $0x2c] sm:$0x1]
      %v257 = vld [vmem:[%s230 + $0x34] sm:$0x1]
      %v258 = vld [vmem:[%s230 + $0x3c] sm:$0x1]
      %v259 = vld [vmem:[%s230] sm:$0xe]
      %v260 = vld [vmem:[%s230 + $0x8] sm:$0xe]
      %v261 = vld [vmem:[%s230 + $0x10] sm:$0xe]
      %v262 = vld [vmem:[%s230 + $0x18] sm:$0xe]
      %v263 = vld [vmem:[%s230 + $0x20] sm:$0xe]
      %v264 = vld [vmem:[%s230 + $0x28] sm:$0xe]
      %v265 = vld [vmem:[%s230 + $0x30] sm:$0xe]
      %v266 = vld [vmem:[%s230 + $0x38] sm:$0xe]
      %s267 = scalar_lea.vmem %s230, 8
      %v268 = vld [vmem:[%s267] sm:$0xf]
      %v269 = vld [vmem:[%s267 + $0x8] sm:$0xf]
      %v270 = vld [vmem:[%s267 + $0x10] sm:$0xf]
      %v271 = vld [vmem:[%s267 + $0x18] sm:$0xf]
      %v272 = vld [vmem:[%s267 + $0x20] sm:$0xf]
      %v273 = vld [vmem:[%s267 + $0x28] sm:$0xf]
      %v274 = vld [vmem:[%s267 + $0x30] sm:$0xf]
      %v275 = vld [vmem:[%s267 + $0x38] sm:$0xf]
      %v276 = vld [vmem:[%s267 + $0x4] sm:$0x1]
      %v277 = vld [vmem:[%s267 + $0xc] sm:$0x1]
      %v278 = vld [vmem:[%s267 + $0x14] sm:$0x1]
      %v279 = vld [vmem:[%s267 + $0x1c] sm:$0x1]
      %v280 = vld [vmem:[%s267 + $0x24] sm:$0x1]
      %v281 = vld [vmem:[%s267 + $0x2c] sm:$0x1]
      %v282 = vld [vmem:[%s267 + $0x34] sm:$0x1]
      %v283 = vld [vmem:[%s267 + $0x3c] sm:$0x1]
      %v284 = vld [vmem:[%s267] sm:$0xe]
      %v285 = vld [vmem:[%s267 + $0x8] sm:$0xe]
      %v286 = vld [vmem:[%s267 + $0x10] sm:$0xe]
      %v287 = vld [vmem:[%s267 + $0x18] sm:$0xe]
      %v288 = vld [vmem:[%s267 + $0x20] sm:$0xe]
      %v289 = vld [vmem:[%s267 + $0x28] sm:$0xe]
      %v290 = vld [vmem:[%s267 + $0x30] sm:$0xe]
      %v291 = vld [vmem:[%s267 + $0x38] sm:$0xe]
      %s292 = scalar_lea.vmem %s230, 16
      %v293 = vld [vmem:[%s292] sm:$0xf]
      %v294 = vld [vmem:[%s292 + $0x8] sm:$0xf]
      %v295 = vld [vmem:[%s292 + $0x10] sm:$0xf]
      %v296 = vld [vmem:[%s292 + $0x18] sm:$0xf]
      %v297 = vld [vmem:[%s292 + $0x20] sm:$0xf]
      %v298 = vld [vmem:[%s292 + $0x28] sm:$0xf]
      %v299 = vld [vmem:[%s292 + $0x30] sm:$0xf]
      %v300 = vld [vmem:[%s292 + $0x38] sm:$0xf]
      %v301 = vld [vmem:[%s292 + $0x4] sm:$0x1]
      %v302 = vld [vmem:[%s292 + $0xc] sm:$0x1]
      %v303 = vld [vmem:[%s292 + $0x14] sm:$0x1]
      %v304 = vld [vmem:[%s292 + $0x1c] sm:$0x1]
      %v305 = vld [vmem:[%s292 + $0x24] sm:$0x1]
      %v306 = vld [vmem:[%s292 + $0x2c] sm:$0x1]
      %v307 = vld [vmem:[%s292 + $0x34] sm:$0x1]
      %v308 = vld [vmem:[%s292 + $0x3c] sm:$0x1]
      %v309 = vld [vmem:[%s292] sm:$0xe]
      %v310 = vld [vmem:[%s292 + $0x8] sm:$0xe]
      %v311 = vld [vmem:[%s292 + $0x10] sm:$0xe]
      %v312 = vld [vmem:[%s292 + $0x18] sm:$0xe]
      %v313 = vld [vmem:[%s292 + $0x20] sm:$0xe]
      %v314 = vld [vmem:[%s292 + $0x28] sm:$0xe]
      %v315 = vld [vmem:[%s292 + $0x30] sm:$0xe]
      %v316 = vld [vmem:[%s292 + $0x38] sm:$0xe]
      %v333 = vunpack.c.l.b16 %v243
      %v334 = vunpack.c.l.b16 %v251
      %v335 = vunpack.c.l.b16 %v244
      %v336 = vunpack.c.l.b16 %v252
      %v337 = vunpack.c.l.b16 %v245
      %v338 = vunpack.c.l.b16 %v253
      %v339 = vunpack.c.l.b16 %v246
      %v340 = vunpack.c.l.b16 %v254
      %v341 = vunpack.c.l.b16 %v247
      %v342 = vunpack.c.l.b16 %v255
      %v343 = vunpack.c.l.b16 %v248
      %v344 = vunpack.c.l.b16 %v256
      %v345 = vunpack.c.l.b16 %v249
      %v346 = vunpack.c.l.b16 %v257
      %v347 = vunpack.c.l.b16 %v250
      %v348 = vunpack.c.l.b16 %v258
      %v349 = vpack.c.b16 %v334, %v333
      %v350 = vpack.c.b16 %v336, %v335
      %v351 = vpack.c.b16 %v338, %v337
      %v352 = vpack.c.b16 %v340, %v339
      %v353 = vpack.c.b16 %v342, %v341
      %v354 = vpack.c.b16 %v344, %v343
      %v355 = vpack.c.b16 %v346, %v345
      %v356 = vpack.c.b16 %v348, %v347
      %v358 = vshrl.u32 %v349, 16
      %v360 = vshll.u32 %v349, 16
      %v362 = vrot.slane %v360, 1
      %v363 = vor.u32 %v358, %v362
      %v365 = vshrl.u32 %v350, 16
      %v367 = vshll.u32 %v350, 16
      %v369 = vrot.slane %v367, 1
      %v370 = vor.u32 %v365, %v369
      %v372 = vshrl.u32 %v351, 16
      %v374 = vshll.u32 %v351, 16
      %v376 = vrot.slane %v374, 1
      %v377 = vor.u32 %v372, %v376
      %v379 = vshrl.u32 %v352, 16
      %v381 = vshll.u32 %v352, 16
      %v383 = vrot.slane %v381, 1
      %v384 = vor.u32 %v379, %v383
      %v386 = vshrl.u32 %v353, 16
      %v388 = vshll.u32 %v353, 16
      %v390 = vrot.slane %v388, 1
      %v391 = vor.u32 %v386, %v390
      %v393 = vshrl.u32 %v354, 16
      %v395 = vshll.u32 %v354, 16
      %v397 = vrot.slane %v395, 1
      %v398 = vor.u32 %v393, %v397
      %v400 = vshrl.u32 %v355, 16
      %v402 = vshll.u32 %v355, 16
      %v404 = vrot.slane %v402, 1
      %v405 = vor.u32 %v400, %v404
      %v407 = vshrl.u32 %v356, 16
      %v409 = vshll.u32 %v356, 16
      %v411 = vrot.slane %v409, 1
      %v412 = vor.u32 %v407, %v411
      %413 = vrot.lane.b32.xlu0 %v363, 8
      %v414 = vpop.permute.xlu0 %413
      %415 = vrot.lane.b32.xlu0 %v370, 8
      %v416 = vpop.permute.xlu0 %415
      %417 = vrot.lane.b32.xlu0 %v377, 8
      %v418 = vpop.permute.xlu0 %417
      %419 = vrot.lane.b32.xlu0 %v384, 8
      %v420 = vpop.permute.xlu0 %419
      %421 = vrot.lane.b32.xlu0 %v391, 8
      %v422 = vpop.permute.xlu0 %421
      %423 = vrot.lane.b32.xlu0 %v398, 8
      %v424 = vpop.permute.xlu0 %423
      %425 = vrot.lane.b32.xlu0 %v405, 8
      %v426 = vpop.permute.xlu0 %425
      %427 = vrot.lane.b32.xlu0 %v412, 8
      %v428 = vpop.permute.xlu0 %427
      %v437 = vunpack.c.l.b16 %v259
      %v438 = vunpack.c.l.b16 %v260
      %v439 = vunpack.c.l.b16 %v261
      %v440 = vunpack.c.l.b16 %v262
      %v441 = vunpack.c.l.b16 %v263
      %v442 = vunpack.c.l.b16 %v264
      %v443 = vunpack.c.l.b16 %v265
      %v444 = vunpack.c.l.b16 %v266
      %v445 = vpack.c.b16 %v334, %v437
      %v446 = vpack.c.b16 %v336, %v438
      %v447 = vpack.c.b16 %v338, %v439
      %v448 = vpack.c.b16 %v340, %v440
      %v449 = vpack.c.b16 %v342, %v441
      %v450 = vpack.c.b16 %v344, %v442
      %v451 = vpack.c.b16 %v346, %v443
      %v452 = vpack.c.b16 %v348, %v444
      %v453 = vrot.slane %v445, 1
      %v454 = vrot.slane %v446, 1
      %v455 = vrot.slane %v447, 1
      %v456 = vrot.slane %v448, 1
      %v457 = vrot.slane %v449, 1
      %v458 = vrot.slane %v450, 1
      %v459 = vrot.slane %v451, 1
      %v460 = vrot.slane %v452, 1
      %461 = vrot.lane.b32.xlu0 %v453, 16
      %v462 = vpop.permute.xlu0 %461
      %463 = vrot.lane.b32.xlu0 %v454, 16
      %v464 = vpop.permute.xlu0 %463
      %465 = vrot.lane.b32.xlu0 %v455, 16
      %v466 = vpop.permute.xlu0 %465
      %467 = vrot.lane.b32.xlu0 %v456, 16
      %v468 = vpop.permute.xlu0 %467
      %469 = vrot.lane.b32.xlu0 %v457, 16
      %v470 = vpop.permute.xlu0 %469
      %471 = vrot.lane.b32.xlu0 %v458, 16
      %v472 = vpop.permute.xlu0 %471
      %473 = vrot.lane.b32.xlu0 %v459, 16
      %v474 = vpop.permute.xlu0 %473
      %475 = vrot.lane.b32.xlu0 %v460, 16
      %v476 = vpop.permute.xlu0 %475
      %v485 = vunpack.c.l.b16 %v268
      %v486 = vunpack.c.l.b16 %v269
      %v487 = vunpack.c.l.b16 %v270
      %v488 = vunpack.c.l.b16 %v271
      %v489 = vunpack.c.l.b16 %v272
      %v490 = vunpack.c.l.b16 %v273
      %v491 = vunpack.c.l.b16 %v274
      %v492 = vunpack.c.l.b16 %v275
      %v493 = vpack.c.b16 %v485, %v485
      %v494 = vpack.c.b16 %v486, %v486
      %v495 = vpack.c.b16 %v487, %v487
      %v496 = vpack.c.b16 %v488, %v488
      %v497 = vpack.c.b16 %v489, %v489
      %v498 = vpack.c.b16 %v490, %v490
      %v499 = vpack.c.b16 %v491, %v491
      %v500 = vpack.c.b16 %v492, %v492
      %501 = vrot.lane.b32.xlu0 %v493, 24
      %v502 = vpop.permute.xlu0 %501
      %503 = vrot.lane.b32.xlu0 %v494, 24
      %v504 = vpop.permute.xlu0 %503
      %505 = vrot.lane.b32.xlu0 %v495, 24
      %v506 = vpop.permute.xlu0 %505
      %507 = vrot.lane.b32.xlu0 %v496, 24
      %v508 = vpop.permute.xlu0 %507
      %509 = vrot.lane.b32.xlu0 %v497, 24
      %v510 = vpop.permute.xlu0 %509
      %511 = vrot.lane.b32.xlu0 %v498, 24
      %v512 = vpop.permute.xlu0 %511
      %513 = vrot.lane.b32.xlu0 %v499, 24
      %v514 = vpop.permute.xlu0 %513
      %515 = vrot.lane.b32.xlu0 %v500, 24
      %v516 = vpop.permute.xlu0 %515
      %v525 = vunpack.c.l.b16 %v276
      %v526 = vunpack.c.l.b16 %v277
      %v527 = vunpack.c.l.b16 %v278
      %v528 = vunpack.c.l.b16 %v279
      %v529 = vunpack.c.l.b16 %v280
      %v530 = vunpack.c.l.b16 %v281
      %v531 = vunpack.c.l.b16 %v282
      %v532 = vunpack.c.l.b16 %v283
      %v533 = vpack.c.b16 %v525, %v485
      %v534 = vpack.c.b16 %v526, %v486
      %v535 = vpack.c.b16 %v527, %v487
      %v536 = vpack.c.b16 %v528, %v488
      %v537 = vpack.c.b16 %v529, %v489
      %v538 = vpack.c.b16 %v530, %v490
      %v539 = vpack.c.b16 %v531, %v491
      %v540 = vpack.c.b16 %v532, %v492
      %v542 = vshrl.u32 %v533, 16
      %v544 = vshll.u32 %v533, 16
      %v546 = vrot.slane %v544, 1
      %v547 = vor.u32 %v542, %v546
      %v549 = vshrl.u32 %v534, 16
      %v551 = vshll.u32 %v534, 16
      %v553 = vrot.slane %v551, 1
      %v554 = vor.u32 %v549, %v553
      %v556 = vshrl.u32 %v535, 16
      %v558 = vshll.u32 %v535, 16
      %v560 = vrot.slane %v558, 1
      %v561 = vor.u32 %v556, %v560
      %v563 = vshrl.u32 %v536, 16
      %v565 = vshll.u32 %v536, 16
      %v567 = vrot.slane %v565, 1
      %v568 = vor.u32 %v563, %v567
      %v570 = vshrl.u32 %v537, 16
      %v572 = vshll.u32 %v537, 16
      %v574 = vrot.slane %v572, 1
      %v575 = vor.u32 %v570, %v574
      %v577 = vshrl.u32 %v538, 16
      %v579 = vshll.u32 %v538, 16
      %v581 = vrot.slane %v579, 1
      %v582 = vor.u32 %v577, %v581
      %v584 = vshrl.u32 %v539, 16
      %v586 = vshll.u32 %v539, 16
      %v588 = vrot.slane %v586, 1
      %v589 = vor.u32 %v584, %v588
      %v591 = vshrl.u32 %v540, 16
      %v593 = vshll.u32 %v540, 16
      %v595 = vrot.slane %v593, 1
      %v596 = vor.u32 %v591, %v595
      %597 = vrot.lane.b32.xlu0 %v547, 32
      %v598 = vpop.permute.xlu0 %597
      %599 = vrot.lane.b32.xlu0 %v554, 32
      %v600 = vpop.permute.xlu0 %599
      %601 = vrot.lane.b32.xlu0 %v561, 32
      %v602 = vpop.permute.xlu0 %601
      %603 = vrot.lane.b32.xlu0 %v568, 32
      %v604 = vpop.permute.xlu0 %603
      %605 = vrot.lane.b32.xlu0 %v575, 32
      %v606 = vpop.permute.xlu0 %605
      %607 = vrot.lane.b32.xlu0 %v582, 32
      %v608 = vpop.permute.xlu0 %607
      %609 = vrot.lane.b32.xlu0 %v589, 32
      %v610 = vpop.permute.xlu0 %609
      %611 = vrot.lane.b32.xlu0 %v596, 32
      %v612 = vpop.permute.xlu0 %611
      %v621 = vunpack.c.l.b16 %v284
      %v622 = vunpack.c.l.b16 %v285
      %v623 = vunpack.c.l.b16 %v286
      %v624 = vunpack.c.l.b16 %v287
      %v625 = vunpack.c.l.b16 %v288
      %v626 = vunpack.c.l.b16 %v289
      %v627 = vunpack.c.l.b16 %v290
      %v628 = vunpack.c.l.b16 %v291
      %v629 = vpack.c.b16 %v525, %v621
      %v630 = vpack.c.b16 %v526, %v622
      %v631 = vpack.c.b16 %v527, %v623
      %v632 = vpack.c.b16 %v528, %v624
      %v633 = vpack.c.b16 %v529, %v625
      %v634 = vpack.c.b16 %v530, %v626
      %v635 = vpack.c.b16 %v531, %v627
      %v636 = vpack.c.b16 %v532, %v628
      %v637 = vrot.slane %v629, 1
      %v638 = vrot.slane %v630, 1
      %v639 = vrot.slane %v631, 1
      %v640 = vrot.slane %v632, 1
      %v641 = vrot.slane %v633, 1
      %v642 = vrot.slane %v634, 1
      %v643 = vrot.slane %v635, 1
      %v644 = vrot.slane %v636, 1
      %645 = vrot.lane.b32.xlu0 %v637, 40
      %v646 = vpop.permute.xlu0 %645
      %647 = vrot.lane.b32.xlu0 %v638, 40
      %v648 = vpop.permute.xlu0 %647
      %649 = vrot.lane.b32.xlu0 %v639, 40
      %v650 = vpop.permute.xlu0 %649
      %651 = vrot.lane.b32.xlu0 %v640, 40
      %v652 = vpop.permute.xlu0 %651
      %653 = vrot.lane.b32.xlu0 %v641, 40
      %v654 = vpop.permute.xlu0 %653
      %655 = vrot.lane.b32.xlu0 %v642, 40
      %v656 = vpop.permute.xlu0 %655
      %657 = vrot.lane.b32.xlu0 %v643, 40
      %v658 = vpop.permute.xlu0 %657
      %659 = vrot.lane.b32.xlu0 %v644, 40
      %v660 = vpop.permute.xlu0 %659
      %v669 = vunpack.c.l.b16 %v293
      %v670 = vunpack.c.l.b16 %v294
      %v671 = vunpack.c.l.b16 %v295
      %v672 = vunpack.c.l.b16 %v296
      %v673 = vunpack.c.l.b16 %v297
      %v674 = vunpack.c.l.b16 %v298
      %v675 = vunpack.c.l.b16 %v299
      %v676 = vunpack.c.l.b16 %v300
      %v677 = vpack.c.b16 %v669, %v669
      %v678 = vpack.c.b16 %v670, %v670
      %v679 = vpack.c.b16 %v671, %v671
      %v680 = vpack.c.b16 %v672, %v672
      %v681 = vpack.c.b16 %v673, %v673
      %v682 = vpack.c.b16 %v674, %v674
      %v683 = vpack.c.b16 %v675, %v675
      %v684 = vpack.c.b16 %v676, %v676
      %685 = vrot.lane.b32.xlu0 %v677, 48
      %v686 = vpop.permute.xlu0 %685
      %687 = vrot.lane.b32.xlu0 %v678, 48
      %v688 = vpop.permute.xlu0 %687
      %689 = vrot.lane.b32.xlu0 %v679, 48
      %v690 = vpop.permute.xlu0 %689
      %691 = vrot.lane.b32.xlu0 %v680, 48
      %v692 = vpop.permute.xlu0 %691
      %693 = vrot.lane.b32.xlu0 %v681, 48
      %v694 = vpop.permute.xlu0 %693
      %695 = vrot.lane.b32.xlu0 %v682, 48
      %v696 = vpop.permute.xlu0 %695
      %697 = vrot.lane.b32.xlu0 %v683, 48
      %v698 = vpop.permute.xlu0 %697
      %699 = vrot.lane.b32.xlu0 %v684, 48
      %v700 = vpop.permute.xlu0 %699
      %v709 = vunpack.c.l.b16 %v301
      %v710 = vunpack.c.l.b16 %v302
      %v711 = vunpack.c.l.b16 %v303
      %v712 = vunpack.c.l.b16 %v304
      %v713 = vunpack.c.l.b16 %v305
      %v714 = vunpack.c.l.b16 %v306
      %v715 = vunpack.c.l.b16 %v307
      %v716 = vunpack.c.l.b16 %v308
      %v717 = vpack.c.b16 %v709, %v669
      %v718 = vpack.c.b16 %v710, %v670
      %v719 = vpack.c.b16 %v711, %v671
      %v720 = vpack.c.b16 %v712, %v672
      %v721 = vpack.c.b16 %v713, %v673
      %v722 = vpack.c.b16 %v714, %v674
      %v723 = vpack.c.b16 %v715, %v675
      %v724 = vpack.c.b16 %v716, %v676
      %v726 = vshrl.u32 %v717, 16
      %v728 = vshll.u32 %v717, 16
      %v730 = vrot.slane %v728, 1
      %v731 = vor.u32 %v726, %v730
      %v733 = vshrl.u32 %v718, 16
      %v735 = vshll.u32 %v718, 16
      %v737 = vrot.slane %v735, 1
      %v738 = vor.u32 %v733, %v737
      %v740 = vshrl.u32 %v719, 16
      %v742 = vshll.u32 %v719, 16
      %v744 = vrot.slane %v742, 1
      %v745 = vor.u32 %v740, %v744
      %v747 = vshrl.u32 %v720, 16
      %v749 = vshll.u32 %v720, 16
      %v751 = vrot.slane %v749, 1
      %v752 = vor.u32 %v747, %v751
      %v754 = vshrl.u32 %v721, 16
      %v756 = vshll.u32 %v721, 16
      %v758 = vrot.slane %v756, 1
      %v759 = vor.u32 %v754, %v758
      %v761 = vshrl.u32 %v722, 16
      %v763 = vshll.u32 %v722, 16
      %v765 = vrot.slane %v763, 1
      %v766 = vor.u32 %v761, %v765
      %v768 = vshrl.u32 %v723, 16
      %v770 = vshll.u32 %v723, 16
      %v772 = vrot.slane %v770, 1
      %v773 = vor.u32 %v768, %v772
      %v775 = vshrl.u32 %v724, 16
      %v777 = vshll.u32 %v724, 16
      %v779 = vrot.slane %v777, 1
      %v780 = vor.u32 %v775, %v779
      %781 = vrot.lane.b32.xlu0 %v731, 56
      %v782 = vpop.permute.xlu0 %781
      %783 = vrot.lane.b32.xlu0 %v738, 56
      %v784 = vpop.permute.xlu0 %783
      %785 = vrot.lane.b32.xlu0 %v745, 56
      %v786 = vpop.permute.xlu0 %785
      %787 = vrot.lane.b32.xlu0 %v752, 56
      %v788 = vpop.permute.xlu0 %787
      %789 = vrot.lane.b32.xlu0 %v759, 56
      %v790 = vpop.permute.xlu0 %789
      %791 = vrot.lane.b32.xlu0 %v766, 56
      %v792 = vpop.permute.xlu0 %791
      %793 = vrot.lane.b32.xlu0 %v773, 56
      %v794 = vpop.permute.xlu0 %793
      %795 = vrot.lane.b32.xlu0 %v780, 56
      %v796 = vpop.permute.xlu0 %795
      %v805 = vunpack.c.l.b16 %v309
      %v806 = vunpack.c.l.b16 %v310
      %v807 = vunpack.c.l.b16 %v311
      %v808 = vunpack.c.l.b16 %v312
      %v809 = vunpack.c.l.b16 %v313
      %v810 = vunpack.c.l.b16 %v314
      %v811 = vunpack.c.l.b16 %v315
      %v812 = vunpack.c.l.b16 %v316
      %v813 = vpack.c.b16 %v709, %v805
      %v814 = vpack.c.b16 %v710, %v806
      %v815 = vpack.c.b16 %v711, %v807
      %v816 = vpack.c.b16 %v712, %v808
      %v817 = vpack.c.b16 %v713, %v809
      %v818 = vpack.c.b16 %v714, %v810
      %v819 = vpack.c.b16 %v715, %v811
      %v820 = vpack.c.b16 %v716, %v812
      %v821 = vrot.slane %v813, 1
      %v822 = vrot.slane %v814, 1
      %v823 = vrot.slane %v815, 1
      %v824 = vrot.slane %v816, 1
      %v825 = vrot.slane %v817, 1
      %v826 = vrot.slane %v818, 1
      %v827 = vrot.slane %v819, 1
      %v828 = vrot.slane %v820, 1
      %829 = vrot.lane.b32.xlu0 %v821, 64
      %v830 = vpop.permute.xlu0 %829
      %831 = vrot.lane.b32.xlu0 %v822, 64
      %v832 = vpop.permute.xlu0 %831
      %833 = vrot.lane.b32.xlu0 %v823, 64
      %v834 = vpop.permute.xlu0 %833
      %835 = vrot.lane.b32.xlu0 %v824, 64
      %v836 = vpop.permute.xlu0 %835
      %837 = vrot.lane.b32.xlu0 %v825, 64
      %v838 = vpop.permute.xlu0 %837
      %839 = vrot.lane.b32.xlu0 %v826, 64
      %v840 = vpop.permute.xlu0 %839
      %841 = vrot.lane.b32.xlu0 %v827, 64
      %v842 = vpop.permute.xlu0 %841
      %843 = vrot.lane.b32.xlu0 %v828, 64
      %v844 = vpop.permute.xlu0 %843
      %vm845 = vcmask 64512
      %v848 = vsel %vm845, %v243, %v414
      %v851 = vsel %vm845, %v244, %v416
      %v854 = vsel %vm845, %v245, %v418
      %v857 = vsel %vm845, %v246, %v420
      %v860 = vsel %vm845, %v247, %v422
      %v863 = vsel %vm845, %v248, %v424
      %v866 = vsel %vm845, %v249, %v426
      %v869 = vsel %vm845, %v250, %v428
      %vm870 = vcmask 130048
      %v872 = vsel %vm870, %v848, %v462
      %v874 = vsel %vm870, %v851, %v464
      %v876 = vsel %vm870, %v854, %v466
      %v878 = vsel %vm870, %v857, %v468
      %v880 = vsel %vm870, %v860, %v470
      %v882 = vsel %vm870, %v863, %v472
      %v884 = vsel %vm870, %v866, %v474
      %v886 = vsel %vm870, %v869, %v476
      %vm887 = vcmask 195584
      %v889 = vsel %vm887, %v872, %v502
      %v891 = vsel %vm887, %v874, %v504
      %v893 = vsel %vm887, %v876, %v506
      %v895 = vsel %vm887, %v878, %v508
      %v897 = vsel %vm887, %v880, %v510
      %v899 = vsel %vm887, %v882, %v512
      %v901 = vsel %vm887, %v884, %v514
      %v903 = vsel %vm887, %v886, %v516
      %vm904 = vcmask 261120
      %v906 = vsel %vm904, %v889, %v598
      %v908 = vsel %vm904, %v891, %v600
      %v910 = vsel %vm904, %v893, %v602
      %v912 = vsel %vm904, %v895, %v604
      %v914 = vsel %vm904, %v897, %v606
      %v916 = vsel %vm904, %v899, %v608
      %v918 = vsel %vm904, %v901, %v610
      %v920 = vsel %vm904, %v903, %v612
      %vm921 = vcmask 326656
      %v923 = vsel %vm921, %v906, %v646
      %v925 = vsel %vm921, %v908, %v648
      %v927 = vsel %vm921, %v910, %v650
      %v929 = vsel %vm921, %v912, %v652
      %v931 = vsel %vm921, %v914, %v654
      %v933 = vsel %vm921, %v916, %v656
      %v935 = vsel %vm921, %v918, %v658
      %v937 = vsel %vm921, %v920, %v660
      %vm938 = vcmask 392192
      %v940 = vsel %vm938, %v923, %v686
      %v942 = vsel %vm938, %v925, %v688
      %v944 = vsel %vm938, %v927, %v690
      %v946 = vsel %vm938, %v929, %v692
      %v948 = vsel %vm938, %v931, %v694
      %v950 = vsel %vm938, %v933, %v696
      %v952 = vsel %vm938, %v935, %v698
      %v954 = vsel %vm938, %v937, %v700
      %vm955 = vcmask 457728
      %v957 = vsel %vm955, %v940, %v782
      %v959 = vsel %vm955, %v942, %v784
      %v961 = vsel %vm955, %v944, %v786
      %v963 = vsel %vm955, %v946, %v788
      %v965 = vsel %vm955, %v948, %v790
      %v967 = vsel %vm955, %v950, %v792
      %v969 = vsel %vm955, %v952, %v794
      %v971 = vsel %vm955, %v954, %v796
      %vm972 = vcmask 523264
      %v974 = vsel %vm972, %v957, %v830
      %v976 = vsel %vm972, %v959, %v832
      %v978 = vsel %vm972, %v961, %v834
      %v980 = vsel %vm972, %v963, %v836
      %v982 = vsel %vm972, %v965, %v838
      %v984 = vsel %vm972, %v967, %v840
      %v986 = vsel %vm972, %v969, %v842
      %v988 = vsel %vm972, %v971, %v844
      %v989 = vld [vmem:[%s1] sm:$0xf]
      %v990 = vld [vmem:[%s1 + $0x4] sm:$0xf]
      %v991 = vld [vmem:[%s1 + $0x8] sm:$0xf]
      %v992 = vld [vmem:[%s1 + $0xc] sm:$0xf]
      %v993 = vld [vmem:[%s1 + $0x10] sm:$0xf]
      %v994 = vld [vmem:[%s1 + $0x14] sm:$0xf]
      %v995 = vld [vmem:[%s1 + $0x18] sm:$0xf]
      %v996 = vld [vmem:[%s1 + $0x1c] sm:$0xf]
      %v997 = vld [vmem:[%s1 + $0x20] sm:$0xf]
      %v998 = vld [vmem:[%s2] sm:$0x1]
      %v1000 = vlaneseq
      %v1001 = vshrl.u32 %v1000, 7
      %v1002 = vsub.s32 0, %v1001
      %v1003 = vrot.slane %v998, %v1002
      %v1013 = vunpack.c.l.b16 %v974
      %v1014 = vunpack.c.l.b16 %v976
      %v1015 = vunpack.c.l.b16 %v978
      %v1016 = vunpack.c.l.b16 %v980
      %v1017 = vunpack.c.l.b16 %v982
      %v1018 = vunpack.c.l.b16 %v984
      %v1019 = vunpack.c.l.b16 %v986
      %v1020 = vunpack.c.l.b16 %v988
      %v1021 = vpack.c.b16 %v1014, %v1013
      %v1022 = vpack.c.b16 %v1016, %v1015
      %v1023 = vpack.c.b16 %v1018, %v1017
      %v1024 = vpack.c.b16 %v1020, %v1019
      %v1034 = vunpack.c.l.b16 %v989
      %v1035 = vunpack.c.l.b16 %v990
      %v1036 = vunpack.c.l.b16 %v991
      %v1037 = vunpack.c.l.b16 %v992
      %v1038 = vunpack.c.l.b16 %v993
      %v1039 = vunpack.c.l.b16 %v994
      %v1040 = vunpack.c.l.b16 %v995
      %v1041 = vunpack.c.l.b16 %v996
      %v1042 = vunpack.c.l.b16 %v997
      %v1043 = vpack.c.b16 %v1035, %v1034
      %v1044 = vpack.c.b16 %v1037, %v1036
      %v1045 = vpack.c.b16 %v1039, %v1038
      %v1046 = vpack.c.b16 %v1041, %v1040
      %v1047 = vpack.c.b16 %v1042, %v1042
      %vm1052 = vcmask 588800
      %v1054 = vsel %vm1052, %v1021, 0
      %v1057 = vsel %vm1052, %v1022, 0
      %v1060 = vsel %vm1052, %v1023, 0
      %v1063 = vsel %vm1052, %v1024, 0
      %vm1065 = vcmask 1043456
      %v1067 = vsel %vm1065, %v1047, 0
      %1069 = vmatprep.subr.bf16.mxu0 0
      %1070 = vmatpush1.bf16.msra.mxu0 0
      %1071 = vmatprep.subr.bf16.mxu0 0
      %1072 = vmatpush1.bf16.msra.mxu0 0
      %1073 = vmatprep.subr.bf16.mxu0 0
      %1074 = vmatpush1.bf16.msra.mxu0 0
      %1075 = vmatprep.subr.bf16.mxu0 0
      %1076 = vmatpush1.bf16.msra.mxu0 %v1067
      %1077 = vmatprep.subr.bf16.mxu0 0
      %1078 = vmatpush1.bf16.msra.mxu0 %v1046
      %1079 = vmatprep.subr.bf16.mxu0 0
      %1080 = vmatpush1.bf16.msra.mxu0 %v1045
      %1081 = vmatprep.subr.bf16.mxu0 0
      %1082 = vmatpush1.bf16.msra.mxu0 %v1044
      %1083 = vmatprep.subr.bf16.mxu0 0
      %1084 = vmatpush1.bf16.msra.mxu0 %v1043
      %1085 = vmatprep.subr.bf16.mxu0 0
      %1086 = vmatpush2.bf16.msra.mxu0 0
      %1087 = vmatprep.subr.bf16.mxu0 0
      %1088 = vmatpush2.bf16.msra.mxu0 0
      %1089 = vmatprep.subr.bf16.mxu0 0
      %1090 = vmatpush2.bf16.msra.mxu0 0
      %1091 = vmatprep.subr.bf16.mxu0 0
      %1092 = vmatpush2.bf16.msra.mxu0 0
      %1093 = vmatprep.subr.bf16.mxu0 0
      %1094 = vmatpush2.bf16.msra.mxu0 0
      %1095 = vmatprep.subr.bf16.mxu0 0
      %1096 = vmatpush2.bf16.msra.mxu0 0
      %1097 = vmatprep.subr.bf16.mxu0 0
      %1098 = vmatpush2.bf16.msra.mxu0 0
      %1099 = vmatprep.subr.bf16.mxu0 0
      %1100 = vmatpush2.bf16.msra.mxu0 0
      %1101 = vmatprep.mubr.bf16.mxu0 0
      %1102 = vmatmul.mubr.bf16.gmra.mxu0 %v1054
      %v1103 = vpop.f32.mrf.mxu0
      %v1104 = vadd.f32 %v1003, %v1103
      %v1105 = vpop.f32.mrf.mxu0
      %v1106 = vpop.f32.mrf.mxu0
      %v1107 = vadd.f32 %v1003, %v1106
      %v1108 = vpop.f32.mrf.mxu0
      %1109 = vmatprep.mubr.bf16.mxu0 0
      %1110 = vmatmul.mubr.bf16.gmra.mxu0 %v1057
      %v1111 = vpop.f32.mrf.mxu0
      %v1112 = vadd.f32 %v1003, %v1111
      %v1113 = vpop.f32.mrf.mxu0
      %v1114 = vpop.f32.mrf.mxu0
      %v1115 = vadd.f32 %v1003, %v1114
      %v1116 = vpop.f32.mrf.mxu0
      %1117 = vmatprep.mubr.bf16.mxu0 0
      %1118 = vmatmul.mubr.bf16.gmra.mxu0 %v1060
      %v1119 = vpop.f32.mrf.mxu0
      %v1120 = vadd.f32 %v1003, %v1119
      %v1121 = vpop.f32.mrf.mxu0
      %v1122 = vpop.f32.mrf.mxu0
      %v1123 = vadd.f32 %v1003, %v1122
      %v1124 = vpop.f32.mrf.mxu0
      %1125 = vmatprep.mubr.bf16.mxu0 0
      %1126 = vmatmul.mubr.bf16.gmra.mxu0 %v1063
      %v1127 = vpop.f32.mrf.mxu0
      %v1128 = vadd.f32 %v1003, %v1127
      %v1129 = vpop.f32.mrf.mxu0
      %v1130 = vpop.f32.mrf.mxu0
      %v1131 = vadd.f32 %v1003, %v1130
      %v1132 = vpop.f32.mrf.mxu0
      %1133 = vdwg.mxu0
      %vm1134 = vcmp.ge.f32.partialorder %v1104, 0.0
      %vm1135 = vcmp.ge.f32.partialorder %v1107, 0.0
      %vm1136 = vcmp.ge.f32.partialorder %v1112, 0.0
      %vm1137 = vcmp.ge.f32.partialorder %v1115, 0.0
      %vm1138 = vcmp.ge.f32.partialorder %v1120, 0.0
      %vm1139 = vcmp.ge.f32.partialorder %v1123, 0.0
      %vm1140 = vcmp.ge.f32.partialorder %v1128, 0.0
      %vm1141 = vcmp.ge.f32.partialorder %v1131, 0.0
      %v1142 = vmul.f32 %v1104, 0.1
      %v1143 = vmul.f32 %v1107, 0.1
      %v1144 = vmul.f32 %v1112, 0.1
      %v1145 = vmul.f32 %v1115, 0.1
      %v1146 = vmul.f32 %v1120, 0.1
      %v1147 = vmul.f32 %v1123, 0.1
      %v1148 = vmul.f32 %v1128, 0.1
      %v1149 = vmul.f32 %v1131, 0.1
      %v1150 = vsel %vm1134, %v1104, %v1142
      %v1151 = vsel %vm1135, %v1107, %v1143
      %v1152 = vsel %vm1136, %v1112, %v1144
      %v1153 = vsel %vm1137, %v1115, %v1145
      %v1154 = vsel %vm1138, %v1120, %v1146
      %v1155 = vsel %vm1139, %v1123, %v1147
      %v1156 = vsel %vm1140, %v1128, %v1148
      %v1157 = vsel %vm1141, %v1131, %v1149
      %v1158 = vpack.c.bf16 %v1151, %v1150
      %v1159 = vpack.c.bf16 %v1153, %v1152
      %v1160 = vpack.c.bf16 %v1155, %v1154
      %v1161 = vpack.c.bf16 %v1157, %v1156
      %v1166 = vunpack.c.l.b16 %v1158
      %v1167 = vunpack.c.h.b16 %v1158
      %v1168 = vunpack.c.l.b16 %v1159
      %v1169 = vunpack.c.h.b16 %v1159
      %v1170 = vunpack.c.l.b16 %v1160
      %v1171 = vunpack.c.h.b16 %v1160
      %v1172 = vunpack.c.l.b16 %v1161
      %v1173 = vunpack.c.h.b16 %v1161
      %v1174 = vpack.c.b16 %v1166, %v1166
      %v1175 = vpack.c.b16 %v1167, %v1167
      %v1176 = vpack.c.b16 %v1168, %v1168
      %v1177 = vpack.c.b16 %v1169, %v1169
      %v1178 = vpack.c.b16 %v1170, %v1170
      %v1179 = vpack.c.b16 %v1171, %v1171
      %v1180 = vpack.c.b16 %v1172, %v1172
      %v1181 = vpack.c.b16 %v1173, %v1173
      %vm1190 = vcmask 60416
      %1191 = vst.msk [vmem:[%s235] sm:$0xf] %vm1190, %v1174
      %1192 = vst.msk [vmem:[%s235 + $0x4] sm:$0xf] %vm1190, %v1175
      %1193 = vst.msk [vmem:[%s235 + $0x8] sm:$0xf] %vm1190, %v1176
      %1194 = vst.msk [vmem:[%s235 + $0xc] sm:$0xf] %vm1190, %v1177
      %1195 = vst.msk [vmem:[%s235 + $0x10] sm:$0xf] %vm1190, %v1178
      %1196 = vst.msk [vmem:[%s235 + $0x14] sm:$0xf] %vm1190, %v1179
      %1197 = vst.msk [vmem:[%s235 + $0x18] sm:$0xf] %vm1190, %v1180
      %1198 = vst.msk [vmem:[%s235 + $0x1c] sm:$0xf] %vm1190, %v1181
      %v1199 = vsel %vm845, %v1150, 0.0
      %v1200 = vsel %vm845, %v1151, 0.0
      %v1201 = vadd.f32 %v1199, %v1200
      %v1202 = vsel %vm845, %v1152, 0.0
      %v1203 = vadd.f32 %v1201, %v1202
      %v1204 = vsel %vm845, %v1153, 0.0
      %v1205 = vadd.f32 %v1203, %v1204
      %v1206 = vsel %vm845, %v1154, 0.0
      %v1207 = vadd.f32 %v1205, %v1206
      %v1208 = vsel %vm845, %v1155, 0.0
      %v1209 = vadd.f32 %v1207, %v1208
      %v1210 = vsel %vm845, %v1156, 0.0
      %v1211 = vadd.f32 %v1209, %v1210
      %v1212 = vsel %vm845, %v1157, 0.0
      %v1213 = vadd.f32 %v1211, %v1212
      %v1214 = vrot.slane %v1213, 4
      %v1215 = vadd.f32 %v1213, %v1214
      %v1216 = vrot.slane %v1215, 2
      %v1217 = vadd.f32 %v1215, %v1216
      %v1218 = vrot.slane %v1217, 1
      %v1219 = vadd.f32 %v1217, %v1218
      %vm1220 = vcmask 57344
      %1221 = vst.msk [vmem:[%s238] sm:$0x1] %vm1220, %v1219
      %v1222 = vmul.f32 %v1150, %v1150
      %v1223 = vmul.f32 %v1151, %v1151
      %v1224 = vmul.f32 %v1152, %v1152
      %v1225 = vmul.f32 %v1153, %v1153
      %v1226 = vmul.f32 %v1154, %v1154
      %v1227 = vmul.f32 %v1155, %v1155
      %v1228 = vmul.f32 %v1156, %v1156
      %v1229 = vmul.f32 %v1157, %v1157
      %v1230 = vsel %vm845, %v1222, 0.0
      %v1231 = vsel %vm845, %v1223, 0.0
      %v1232 = vadd.f32 %v1230, %v1231
      %v1233 = vsel %vm845, %v1224, 0.0
      %v1234 = vadd.f32 %v1232, %v1233
      %v1235 = vsel %vm845, %v1225, 0.0
      %v1236 = vadd.f32 %v1234, %v1235
      %v1237 = vsel %vm845, %v1226, 0.0
      %v1238 = vadd.f32 %v1236, %v1237
      %v1239 = vsel %vm845, %v1227, 0.0
      %v1240 = vadd.f32 %v1238, %v1239
      %v1241 = vsel %vm845, %v1228, 0.0
      %v1242 = vadd.f32 %v1240, %v1241
      %v1243 = vsel %vm845, %v1229, 0.0
      %v1244 = vadd.f32 %v1242, %v1243
      %v1245 = vrot.slane %v1244, 4
      %v1246 = vadd.f32 %v1244, %v1245
      %v1247 = vrot.slane %v1246, 2
      %v1248 = vadd.f32 %v1246, %v1247
      %v1249 = vrot.slane %v1248, 1
      %v1250 = vadd.f32 %v1248, %v1249
      %1251 = vst.msk [vmem:[%s241] sm:$0x1] %vm1220, %v1250
      %p1252 = scmp.lt.s32.totalorder %s17, 1
      %s1253 = scalar_select %p1252, %s17, 1
      %s1254 = smul.addr %s1253, 8
      %s1255 = smul.addr %s1254, 4
      %s1256 = scalar_lea.vmem %s3, %s1255
      %p1257 = scmp.lt.s32.totalorder %s17, 1
      %s1258 = scalar_select %p1257, %s17, 1
      %s1259 = scalar_lea.vmem %s4, %s1258
      %p1260 = scmp.lt.s32.totalorder %s17, 1
      %s1261 = scalar_select %p1260, %s17, 1
      %s1262 = scalar_lea.vmem %s5, %s1261
      // Predicated region
      $region33: #{pyramid_block.8} parent=31 // pred_check
        %p1263 = pneg %p103
      $region34: #{pyramid_block.8} parent=31 // pred_check_branch
        %1265 = sbr.rel (%p1263) target = $region36
      $region35: #{pyramid_block.8} parent=31 // pred_region
        _
      $region36: #{pyramid_block.8} parent=31 // pred_fallthru
        _
      // Predicated region
      $region37: #{pyramid_block.8} parent=31 // pred_check
        %p1266 = pneg %p129
      $region38: #{pyramid_block.8} parent=31 // pred_check_branch
        %1268 = sbr.rel (%p1266) target = $region40
      $region39: #{pyramid_block.8} parent=31 // pred_region
        _
      $region40: #{pyramid_block.8} parent=31 // pred_fallthru
        _
      // Predicated region
      $region41: #{pyramid_block.8} parent=31 // pred_check
        %p1269 = pneg %p155
      $region42: #{pyramid_block.8} parent=31 // pred_check_branch
        %1271 = sbr.rel (%p1269) target = $region44
      $region43: #{pyramid_block.8} parent=31 // pred_region
        _
      $region44: #{pyramid_block.8} parent=31 // pred_fallthru
        _
    $region32: #{pyramid_block.8} parent=5 // pred_fallthru
      _
    %p1272 = scmp.le.s32.totalorder 2, %s12
    // Predicated region
    $region45: #{pyramid_block.8} parent=5 // pred_check
      %p1273 = pneg %p1272
    $region46: #{pyramid_block.8} parent=5 // pred_check_branch
      %1275 = sbr.rel (%p1273) target = $region48
    $region47: #{pyramid_block.8} parent=5 // pred_region
      %s1276 = ssub.s32 %s12, 2
      // Predicated region
      $region49: #{pyramid_block.8} parent=47 // pred_check
        %p1277 = pneg %p109
      $region50: #{pyramid_block.8} parent=47 // pred_check_branch
        %1279 = sbr.rel (%p1277) target = $region52
      $region51: #{pyramid_block.8} parent=47 // pred_region
        %p1280 = scmp.lt.s32.totalorder %s18, 1
        %s1281 = scalar_select %p1280, %s18, 1
        %s1282 = smul.addr %s1281, 8
        %s1283 = smul.addr %s1282, 4
        %s1284 = scalar_lea.vmem %s3, %s1283
      $region52: #{pyramid_block.8} parent=47 // pred_fallthru
        _
      // Predicated region
      $region53: #{pyramid_block.8} parent=47 // pred_check
        %p1285 = pneg %p135
      $region54: #{pyramid_block.8} parent=47 // pred_check_branch
        %1287 = sbr.rel (%p1285) target = $region56
      $region55: #{pyramid_block.8} parent=47 // pred_region
        %p1288 = scmp.lt.s32.totalorder %s18, 1
        %s1289 = scalar_select %p1288, %s18, 1
        %s1290 = scalar_lea.vmem %s4, %s1289
      $region56: #{pyramid_block.8} parent=47 // pred_fallthru
        _
      // Predicated region
      $region57: #{pyramid_block.8} parent=47 // pred_check
        %p1291 = pneg %p161
      $region58: #{pyramid_block.8} parent=47 // pred_check_branch
        %1293 = sbr.rel (%p1291) target = $region60
      $region59: #{pyramid_block.8} parent=47 // pred_region
        %p1294 = scmp.lt.s32.totalorder %s18, 1
        %s1295 = scalar_select %p1294, %s18, 1
        %s1296 = scalar_lea.vmem %s5, %s1295
      $region60: #{pyramid_block.8} parent=47 // pred_fallthru
        _
    $region48: #{pyramid_block.8} parent=5 // pred_fallthru
      _
  $region6: #{pyramid_block.8} parent=0 // loop_footer
    %s16 = sadd.s32 1, %s12
  $region7: #{pyramid_block.8} parent=0 // loop_footer_branch
    %11 = sbr.rel target = $region3
  $region8: #{pyramid_block.8} parent=0 // loop_exit
    _

</llo_original>
